<compile_context>
chip_gen: v7x
topology: tpu7x:2x2x1
jax: 0.10.0
libtpu: 0.0.40
codegen_flags: <defaults>
</compile_context>

<pallas_src>
import math

import jax
import jax.numpy as jnp
from jax.experimental import pallas as pl
from jax.experimental.pallas import tpu as pltpu


def _decoder_kernel(x_ref, wih_ref, whh_ref, blstm_ref,
                    depTm_ref, depm_ref,
                    w_hmc_ref, b_hmc_ref, wo_ref, bo_ref, tgt_ref,
                    loss_ref, xw_ref, hs_ref):
    # x_ref:     (L, E)   input embeddings (teacher forced), one sentence
    # wih_ref:   (E, 4H)  LSTM input weights, pre-transposed, i/f/o cols pre-scaled by 0.5
    # whh_ref:   (H, 4H)  LSTM hidden weights, pre-transposed, i/f/o cols pre-scaled by 0.5
    # blstm_ref: (1, 4H)  (b_ih + b_hh), i/f/o entries pre-scaled by 0.5
    # depTm_ref: (L, L)   dep_tree.T with strict lower-triangular mask (heads term)
    # depm_ref:  (L, L)   dep_tree   with strict lower-triangular mask (mods term)
    # w_hmc_ref: (H, 3O)  [head_fc | mod_fc | curr_fc] weights, pre-transposed
    # b_hmc_ref: (1, 3O)  fused biases
    # wo_ref:    (O, V)   output_fc weight pre-transposed, bo_ref: (1, V)
    # tgt_ref:   (L, 1)   int32 target word ids
    # loss_ref:  (1, 1)   scalar output
    # xw_ref:    (L, 4H)  scratch: hoisted input projection
    # hs_ref:    (L, H)   scratch: LSTM hidden states
    L = x_ref.shape[0]
    H = whh_ref.shape[0]
    O = w_hmc_ref.shape[1] // 3
    V = wo_ref.shape[1]

    whh = whh_ref[...]

    # ---- hoisted input projection (independent of h -> off the serial path) -----
    xw_ref[...] = (jnp.dot(x_ref[...], wih_ref[...],
                           preferred_element_type=jnp.float32)
                   + blstm_ref[...])                                     # (L, 4H)

    # ---- sequential LSTM recurrence (PyTorch gate order i,f,g,o) ----------------
    # One full-width tanh per step covers all four gates because the i/f/o columns
    # were pre-scaled by 0.5: sigmoid(x) = 0.5 * tanh(x/2) + 0.5.
    def step(t, carry):
        h, c = carry                                                     # (1, H) each
        gates = xw_ref[pl.ds(t, 1), :] + jnp.dot(
            h, whh, preferred_element_type=jnp.float32)                  # (1, 4H)
        tg = jnp.tanh(gates)                                             # 1 EUP op
        sg = 0.5 * tg + 0.5                                              # sigmoids
        i_g = sg[:, 0 * H:1 * H]
        f_g = sg[:, 1 * H:2 * H]
        g_g = tg[:, 2 * H:3 * H]
        o_g = sg[:, 3 * H:4 * H]
        c_new = f_g * c + i_g * g_g
        h_new = o_g * jnp.tanh(c_new)
        hs_ref[pl.ds(t, 1), :] = h_new
        return h_new, c_new

    zeros = jnp.zeros((1, H), jnp.float32)
    jax.lax.fori_loop(0, L, step, (zeros, zeros), unroll=True)

    hs = hs_ref[...]                                                     # (L, H)

    # ---- fused head/mod/curr projections, batched over the sequence -------------
    proj = (jnp.dot(hs, w_hmc_ref[...], preferred_element_type=jnp.float32)
            + b_hmc_ref[...])                                            # (L, 3O)
    head_scores = proj[:, 0 * O:1 * O]
    mod_scores = proj[:, 1 * O:2 * O]
    curr = proj[:, 2 * O:3 * O]

    # heads_gcn[i] = sum_{j<i} dep[j, i] * head_scores[j]   (mask baked into depTm)
    # mods_gcn[i]  = sum_{j<i} dep[i, j] * mod_scores[j]    (mask baked into depm)
    heads_gcn = jnp.dot(depTm_ref[...], head_scores,
                        preferred_element_type=jnp.float32)
    mods_gcn = jnp.dot(depm_ref[...], mod_scores,
                       preferred_element_type=jnp.float32)

    gcn_out = jnp.tanh(curr + heads_gcn + mods_gcn)                      # (L, O)
    logits = (jnp.dot(gcn_out, wo_ref[...],
                      preferred_element_type=jnp.float32)
              + bo_ref[...])                                             # (L, V) lane-dense

    # ---- stable NLL without materializing log-probs ------------------------------
    m = jnp.max(logits, axis=-1, keepdims=True)
    z = logits - m
    lse = jnp.log(jnp.sum(jnp.exp(z), axis=-1, keepdims=True))           # (L, 1)
    onehot = (jax.lax.broadcasted_iota(jnp.int32, (L, V), 1)
              == tgt_ref[...]).astype(jnp.float32)
    picked = jnp.sum(onehot * z, axis=-1, keepdims=True)                 # (L, 1)
    per_tok = lse - picked
    loss_ref[...] = jnp.sum(per_tok, axis=0, keepdims=True) * (1.0 / L)  # (1, 1)


@jax.jit
def decoder_forward_batch(emb_table, word_ids_b, dep_tree_b,
                          w_ih, w_hh, b_ih, b_hh,
                          w_head, b_head, w_mod, b_mod,
                          w_curr, b_curr, w_out, b_out):
    """Batched Decoder.forward. word_ids_b[:, 0] is the ROOT token, word_ids_b[:, 1:]
    are the sentence tokens (also the teacher-forcing targets). Returns the
    per-sentence mean reconstruction loss, shape (B,)."""
    # TODO(synk): the PyTorch forward maps raw word strings -> indices through a
    # Python dict (ex_emb_w2i / normalize); that host-side lookup has no Pallas
    # equivalent, so the kernel takes integer ids directly.
    B, Lp1 = word_ids_b.shape
    L = Lp1 - 1
    E = emb_table.shape[1]
    H = w_hh.shape[1]
    O = w_head.shape[0]
    V = w_out.shape[0]

    # ---- one-time parameter preprocessing (inside the single jit) ----------------
    # Pre-scale i/f/o gate columns by 0.5 so a single full-width tanh covers all
    # four gates: sigmoid(x) = 0.5 * tanh(x/2) + 0.5.
    gate_scale = jnp.concatenate([
        jnp.full((2 * H,), 0.5, jnp.float32),   # i, f gates
        jnp.ones((H,), jnp.float32),            # g gate
        jnp.full((H,), 0.5, jnp.float32)])      # o gate
    wih_s = w_ih.T.astype(jnp.float32) * gate_scale[None, :]             # (E, 4H)
    whh_s = w_hh.T.astype(jnp.float32) * gate_scale[None, :]             # (H, 4H)
    blstm_s = ((b_ih + b_hh).astype(jnp.float32) * gate_scale).reshape(1, -1)

    # Fused head/mod/curr projection: one (H, 3O) weight, one (1, 3O) bias.
    w_hmc = jnp.concatenate([w_head.T, w_mod.T, w_curr.T],
                            axis=1).astype(jnp.float32)                  # (H, 3O)
    b_hmc = jnp.concatenate([b_head, b_mod, b_curr]).reshape(1, -1).astype(jnp.float32)

    wo_t = w_out.T.astype(jnp.float32)                                   # (O, V)
    bo = b_out.reshape(1, -1).astype(jnp.float32)                        # (1, V)

    # ---- per-sentence data --------------------------------------------------------
    input_ids = word_ids_b[:, :-1]      # LSTM inputs: ROOT, w_1, ..., w_{L-1}
    target_ids = word_ids_b[:, 1:]      # targets:     w_1, ..., w_L
    x = jnp.take(emb_table, input_ids, axis=0).astype(jnp.float32)       # (B, L, E)

    dep = dep_tree_b[:, :L, :L].astype(jnp.float32)
    # Strict lower-triangular causal mask, baked into dep / dep.T in the wrapper.
    causal = (jnp.arange(L)[:, None] > jnp.arange(L)[None, :]).astype(jnp.float32)
    depT_m = jnp.transpose(dep, (0, 2, 1)) * causal[None]                # heads: dep[j,i], j<i
    dep_m = dep * causal[None]                                           # mods:  dep[i,j], j<i
    tgt = target_ids.reshape(B, L, 1).astype(jnp.int32)

    shared2 = lambda b: (0, 0)
    per_sent = lambda b: (b, 0, 0)

    loss3d = pl.pallas_call(
        _decoder_kernel,
        out_shape=jax.ShapeDtypeStruct((B, 1, 1), jnp.float32),
        grid_spec=pltpu.PrefetchScalarGridSpec(
            num_scalar_prefetch=0,
            grid=(B,),
            in_specs=[
                pl.BlockSpec((None, L, E), per_sent),        # x
                pl.BlockSpec((E, 4 * H), shared2),           # wih (pre-scaled)
                pl.BlockSpec((H, 4 * H), shared2),           # whh (pre-scaled)
                pl.BlockSpec((1, 4 * H), shared2),           # b_ih + b_hh (pre-scaled)
                pl.BlockSpec((None, L, L), per_sent),        # dep.T masked (heads)
                pl.BlockSpec((None, L, L), per_sent),        # dep   masked (mods)
                pl.BlockSpec((H, 3 * O), shared2),           # fused head|mod|curr weight
                pl.BlockSpec((1, 3 * O), shared2),           # fused bias
                pl.BlockSpec((O, V), shared2),               # output_fc weight
                pl.BlockSpec((1, V), shared2),               # output_fc bias
                pl.BlockSpec((None, L, 1), per_sent),        # targets
            ],
            out_specs=pl.BlockSpec((None, 1, 1), per_sent),
            scratch_shapes=[pltpu.VMEM((L, 4 * H), jnp.float32),   # hoisted x @ W_ih
                            pltpu.VMEM((L, H), jnp.float32)]),     # hidden states
        compiler_params=pltpu.CompilerParams(
            dimension_semantics=("parallel",)),
    )(x, wih_s, whh_s, blstm_s, depT_m, dep_m, w_hmc, b_hmc, wo_t, bo, tgt)
    return loss3d[:, 0, 0]


def decoder_forward(emb_table, word_ids, dep_tree, *params):
    """Single-sentence convenience wrapper (matches the PyTorch module interface)."""
    return decoder_forward_batch(emb_table, word_ids[None], dep_tree[None], *params)[0]


def decoder_reference(emb_table, word_ids, dep_tree,
                      w_ih, w_hh, b_ih, b_hh,
                      w_head, b_head, w_mod, b_mod,
                      w_curr, b_curr, w_out, b_out):
    """Pure-JAX mirror of the PyTorch forward (per-step loop), single sentence."""
    L = int(word_ids.shape[0]) - 1
    H = w_hh.shape[1]
    input_ids = word_ids[:-1]
    target_ids = word_ids[1:]
    x = jnp.take(emb_table, input_ids, axis=0).astype(jnp.float32)
    dep = dep_tree[:L, :L].astype(jnp.float32)

    h = jnp.zeros((H,), jnp.float32)
    c = jnp.zeros((H,), jnp.float32)
    head_scores, mod_scores = [], []
    loss = jnp.float32(0.0)
    for i in range(L):
        gates = w_ih @ x[i] + w_hh @ h + b_ih + b_hh
        i_g = jax.nn.sigmoid(gates[0:H])
        f_g = jax.nn.sigmoid(gates[H:2 * H])
        g_g = jnp.tanh(gates[2 * H:3 * H])
        o_g = jax.nn.sigmoid(gates[3 * H:4 * H])
        c = f_g * c + i_g * g_g
        h = o_g * jnp.tanh(c)

        hs_i = w_head @ h + b_head
        ms_i = w_mod @ h + b_mod
        heads_gcn = jnp.zeros_like(hs_i)
        mods_gcn = jnp.zeros_like(ms_i)
        for j in range(i):
            heads_gcn = heads_gcn + dep[j, i] * head_scores[j]
            mods_gcn = mods_gcn + dep[i, j] * mod_scores[j]
        head_scores.append(hs_i)
        mod_scores.append(ms_i)

        gcn_out = jnp.tanh(w_curr @ h + b_curr + heads_gcn + mods_gcn)
        logp = jax.nn.log_softmax(w_out @ gcn_out + b_out)
        loss = loss - logp[target_ids[i]]
    return loss / L


if __name__ == "__main__":
    key = jax.random.PRNGKey(0)
    keys = jax.random.split(key, 13)

    vocab, emb_dim, hid_dim, out_dim = 128, 32, 32, 16
    s_len = 8                                   # sentence length (excluding ROOT)
    batch = 2                                   # sentences per pallas_call (parallel grid)

    def xavier(k, shape):
        bound = math.sqrt(6.0 / (shape[0] + shape[1]))
        return jax.random.uniform(k, shape, jnp.float32, -bound, bound)

    def bias_init(k, n):
        bound = math.sqrt(3.0 / n)
        return jax.random.uniform(k, (n,), jnp.float32, -bound, bound)

    # Frozen pretrained embedding table (ex_w_vec) + word indices + dep_trees.
    emb_table = jax.random.normal(keys[0], (vocab, emb_dim), jnp.float32)
    word_ids_b = jax.random.randint(keys[1], (batch, s_len + 1), 0, vocab, jnp.int32)
    dep_tree_b = jax.random.uniform(keys[2], (batch, s_len + 1, s_len + 1), jnp.float32)

    # LSTM params (PyTorch layout (4H, E)/(4H, H), gate order i,f,g,o);
    # bias init mirrors Decoder._modules_init: i gate 0, f gate 0.5, g/o gates 0.
    w_ih = xavier(keys[3], (4 * hid_dim, emb_dim))
    w_hh = xavier(keys[4], (4 * hid_dim, hid_dim))
    lstm_bias = jnp.concatenate([
        jnp.zeros((hid_dim,), jnp.float32),
        jnp.full((hid_dim,), 0.5, jnp.float32),
        jnp.zeros((2 * hid_dim,), jnp.float32)])
    b_ih = lstm_bias
    b_hh = lstm_bias

    w_head = xavier(keys[5], (out_dim, hid_dim))
    b_head = bias_init(keys[6], out_dim)
    w_mod = xavier(keys[7], (out_dim, hid_dim))
    b_mod = bias_init(keys[8], out_dim)
    w_curr = xavier(keys[9], (out_dim, hid_dim))
    b_curr = bias_init(keys[10], out_dim)
    w_out = xavier(keys[11], (vocab, out_dim))
    b_out = bias_init(keys[12], vocab)

    params = (w_ih, w_hh, b_ih, b_hh, w_head, b_head, w_mod, b_mod,
              w_curr, b_curr, w_out, b_out)

    # Batched kernel run (one grid step per sentence, "parallel" axis).
    losses = decoder_forward_batch(emb_table, word_ids_b, dep_tree_b, *params)
    jax.block_until_ready(losses)
    assert losses.shape == (batch,)
    assert bool(jnp.all(jnp.isfinite(losses))), losses

    # Per-sentence reference check.
    for b in range(batch):
        ref = decoder_reference(emb_table, word_ids_b[b], dep_tree_b[b], *params)
        assert jnp.allclose(losses[b], ref, atol=5e-2, rtol=5e-2), \
            (b, float(losses[b]), float(ref))

    # Single-sentence wrapper path matches the batched path.
    loss0 = decoder_forward(emb_table, word_ids_b[0], dep_tree_b[0], *params)
    jax.block_until_ready(loss0)
    assert loss0.shape == ()
    assert jnp.allclose(loss0, losses[0], atol=1e-5, rtol=1e-5), \
        (float(loss0), float(losses[0]))

    print("KERNEL_OK")
</pallas_src>

<mosaic_0001>
module attributes {stable_mosaic.version = 11 : i64} {
  func.func @_decoder_kernel(%arg0: i32, %arg1: memref<1x8x32xf32, #tpu.memory_space<vmem>>, %arg2: memref<32x128xf32, #tpu.memory_space<vmem>>, %arg3: memref<32x128xf32, #tpu.memory_space<vmem>>, %arg4: memref<1x128xf32, #tpu.memory_space<vmem>>, %arg5: memref<1x8x8xf32, #tpu.memory_space<vmem>>, %arg6: memref<1x8x8xf32, #tpu.memory_space<vmem>>, %arg7: memref<32x48xf32, #tpu.memory_space<vmem>>, %arg8: memref<1x48xf32, #tpu.memory_space<vmem>>, %arg9: memref<16x128xf32, #tpu.memory_space<vmem>>, %arg10: memref<1x128xf32, #tpu.memory_space<vmem>>, %arg11: memref<1x8x1xi32, #tpu.memory_space<vmem>>, %arg12: memref<1x1x1xf32, #tpu.memory_space<vmem>>, %arg13: memref<8x128xf32, #tpu.memory_space<vmem>>, %arg14: memref<8x32xf32, #tpu.memory_space<vmem>>) attributes {dimension_semantics = [#tpu.dimension_semantics<parallel>], iteration_bounds = array<i64: 2>, scalar_prefetch = 0 : i64, scratch_operands = 2 : i64, tpu.core_type = #tpu.core_type<tc>, window_params = [{transform_indices = @transform_0, window_bounds = array<i64: 1, 8, 32>}, {pipeline_mode = #tpu.pipeline_mode<synchronous>, transform_indices = @transform_1, window_bounds = array<i64: 32, 128>}, {pipeline_mode = #tpu.pipeline_mode<synchronous>, transform_indices = @transform_2, window_bounds = array<i64: 32, 128>}, {pipeline_mode = #tpu.pipeline_mode<synchronous>, transform_indices = @transform_3, window_bounds = array<i64: 1, 128>}, {transform_indices = @transform_4, window_bounds = array<i64: 1, 8, 8>}, {transform_indices = @transform_5, window_bounds = array<i64: 1, 8, 8>}, {pipeline_mode = #tpu.pipeline_mode<synchronous>, transform_indices = @transform_6, window_bounds = array<i64: 32, 48>}, {pipeline_mode = #tpu.pipeline_mode<synchronous>, transform_indices = @transform_7, window_bounds = array<i64: 1, 48>}, {pipeline_mode = #tpu.pipeline_mode<synchronous>, transform_indices = @transform_8, window_bounds = array<i64: 16, 128>}, {pipeline_mode = #tpu.pipeline_mode<synchronous>, transform_indices = @transform_9, window_bounds = array<i64: 1, 128>}, {transform_indices = @transform_10, window_bounds = array<i64: 1, 8, 1>}, {transform_indices = @transform_11, window_bounds = array<i64: 1, 1, 1>}]} {
    %c0 = arith.constant 0 : index
    %c0_0 = arith.constant 0 : index
    %0 = vector.load %arg3[%c0, %c0_0] : memref<32x128xf32, #tpu.memory_space<vmem>>, vector<32x128xf32>
    %c0_1 = arith.constant 0 : index
    %c0_2 = arith.constant 0 : index
    %c0_3 = arith.constant 0 : index
    %1 = vector.load %arg1[%c0_1, %c0_2, %c0_3] : memref<1x8x32xf32, #tpu.memory_space<vmem>>, vector<1x8x32xf32>
    %2 = vector.shape_cast %1 : vector<1x8x32xf32> to vector<8x32xf32>
    %c0_4 = arith.constant 0 : index
    %c0_5 = arith.constant 0 : index
    %3 = vector.load %arg2[%c0_4, %c0_5] : memref<32x128xf32, #tpu.memory_space<vmem>>, vector<32x128xf32>
    %cst = arith.constant dense<0.000000e+00> : vector<8x128xf32>
    %4 = tpu.matmul %2, %3, %cst {dimension_numbers = #tpu.dot_dimension_numbers<[1], [0], [0], [1], [0, 0, 1, 1], [], []>} : vector<8x32xf32>, vector<32x128xf32>, vector<8x128xf32> -> vector<8x128xf32>
    %c0_6 = arith.constant 0 : index
    %c0_7 = arith.constant 0 : index
    %5 = vector.load %arg4[%c0_6, %c0_7] : memref<1x128xf32, #tpu.memory_space<vmem>>, vector<1x128xf32>
    %6 = vector.broadcast %5 : vector<1x128xf32> to vector<8x128xf32>
    %7 = arith.addf %4, %6 : vector<8x128xf32>
    %c0_8 = arith.constant 0 : index
    %c0_9 = arith.constant 0 : index
    %8 = vector.load %arg13[%c0_8, %c0_9] : memref<8x128xf32, #tpu.memory_space<vmem>>, vector<8x128xf32>
    tpu.vector_store %arg13[%c0_8, %c0_9], %7 {strides = array<i32>} : memref<8x128xf32, #tpu.memory_space<vmem>>, vector<8x128xf32>,
    %cst_10 = arith.constant 0.000000e+00 : f32
    %9 = vector.broadcast %cst_10 : f32 to vector<1x32xf32>
    %c0_i32 = arith.constant 0 : i32
    %10 = arith.index_cast %c0_i32 : i32 to index
    %c0_11 = arith.constant 0 : index
    %11 = vector.load %arg13[%10, %c0_11] : memref<8x128xf32, #tpu.memory_space<vmem>>, vector<1x128xf32>
    %cst_12 = arith.constant dense<0.000000e+00> : vector<1x128xf32>
    %12 = tpu.matmul %9, %0, %cst_12 {dimension_numbers = #tpu.dot_dimension_numbers<[1], [0], [0], [1], [0, 0, 1, 1], [], []>} : vector<1x32xf32>, vector<32x128xf32>, vector<1x128xf32> -> vector<1x128xf32>
    %13 = arith.addf %11, %12 : vector<1x128xf32>
    %14 = math.tanh %13 : vector<1x128xf32>
    %cst_13 = arith.constant 5.000000e-01 : f32
    %15 = vector.broadcast %cst_13 : f32 to vector<1x128xf32>
    %16 = arith.mulf %15, %14 : vector<1x128xf32>
    %cst_14 = arith.constant 5.000000e-01 : f32
    %17 = vector.broadcast %cst_14 : f32 to vector<1x128xf32>
    %18 = arith.addf %16, %17 : vector<1x128xf32>
    %19 = vector.extract_strided_slice %18 {offsets = [0, 0], sizes = [1, 32], strides = [1, 1]} : vector<1x128xf32> to vector<1x32xf32>
    %20 = vector.extract_strided_slice %18 {offsets = [0, 32], sizes = [1, 32], strides = [1, 1]} : vector<1x128xf32> to vector<1x32xf32>
    %21 = vector.extract_strided_slice %14 {offsets = [0, 64], sizes = [1, 32], strides = [1, 1]} : vector<1x128xf32> to vector<1x32xf32>
    %22 = vector.extract_strided_slice %18 {offsets = [0, 96], sizes = [1, 32], strides = [1, 1]} : vector<1x128xf32> to vector<1x32xf32>
    %23 = arith.mulf %20, %9 : vector<1x32xf32>
    %24 = arith.mulf %19, %21 : vector<1x32xf32>
    %25 = arith.addf %23, %24 : vector<1x32xf32>
    %26 = math.tanh %25 : vector<1x32xf32>
    %27 = arith.mulf %22, %26 : vector<1x32xf32>
    %28 = arith.index_cast %c0_i32 : i32 to index
    %c0_15 = arith.constant 0 : index
    %29 = vector.load %arg14[%28, %c0_15] : memref<8x32xf32, #tpu.memory_space<vmem>>, vector<1x32xf32>
    tpu.vector_store %arg14[%28, %c0_15], %27 {strides = array<i32>} : memref<8x32xf32, #tpu.memory_space<vmem>>, vector<1x32xf32>,
    %c1_i32 = arith.constant 1 : i32
    %30 = arith.index_cast %c1_i32 : i32 to index
    %c0_16 = arith.constant 0 : index
    %31 = vector.load %arg13[%30, %c0_16] : memref<8x128xf32, #tpu.memory_space<vmem>>, vector<1x128xf32>
    %cst_17 = arith.constant dense<0.000000e+00> : vector<1x128xf32>
    %32 = tpu.matmul %27, %0, %cst_17 {dimension_numbers = #tpu.dot_dimension_numbers<[1], [0], [0], [1], [0, 0, 1, 1], [], []>} : vector<1x32xf32>, vector<32x128xf32>, vector<1x128xf32> -> vector<1x128xf32>
    %33 = arith.addf %31, %32 : vector<1x128xf32>
    %34 = math.tanh %33 : vector<1x128xf32>
    %cst_18 = arith.constant 5.000000e-01 : f32
    %35 = vector.broadcast %cst_18 : f32 to vector<1x128xf32>
    %36 = arith.mulf %35, %34 : vector<1x128xf32>
    %cst_19 = arith.constant 5.000000e-01 : f32
    %37 = vector.broadcast %cst_19 : f32 to vector<1x128xf32>
    %38 = arith.addf %36, %37 : vector<1x128xf32>
    %39 = vector.extract_strided_slice %38 {offsets = [0, 0], sizes = [1, 32], strides = [1, 1]} : vector<1x128xf32> to vector<1x32xf32>
    %40 = vector.extract_strided_slice %38 {offsets = [0, 32], sizes = [1, 32], strides = [1, 1]} : vector<1x128xf32> to vector<1x32xf32>
    %41 = vector.extract_strided_slice %34 {offsets = [0, 64], sizes = [1, 32], strides = [1, 1]} : vector<1x128xf32> to vector<1x32xf32>
    %42 = vector.extract_strided_slice %38 {offsets = [0, 96], sizes = [1, 32], strides = [1, 1]} : vector<1x128xf32> to vector<1x32xf32>
    %43 = arith.mulf %40, %25 : vector<1x32xf32>
    %44 = arith.mulf %39, %41 : vector<1x32xf32>
    %45 = arith.addf %43, %44 : vector<1x32xf32>
    %46 = math.tanh %45 : vector<1x32xf32>
    %47 = arith.mulf %42, %46 : vector<1x32xf32>
    %48 = arith.index_cast %c1_i32 : i32 to index
    %c0_20 = arith.constant 0 : index
    %49 = vector.load %arg14[%48, %c0_20] : memref<8x32xf32, #tpu.memory_space<vmem>>, vector<1x32xf32>
    tpu.vector_store %arg14[%48, %c0_20], %47 {strides = array<i32>} : memref<8x32xf32, #tpu.memory_space<vmem>>, vector<1x32xf32>,
    %c2_i32 = arith.constant 2 : i32
    %50 = arith.index_cast %c2_i32 : i32 to index
    %c0_21 = arith.constant 0 : index
    %51 = vector.load %arg13[%50, %c0_21] : memref<8x128xf32, #tpu.memory_space<vmem>>, vector<1x128xf32>
    %cst_22 = arith.constant dense<0.000000e+00> : vector<1x128xf32>
    %52 = tpu.matmul %47, %0, %cst_22 {dimension_numbers = #tpu.dot_dimension_numbers<[1], [0], [0], [1], [0, 0, 1, 1], [], []>} : vector<1x32xf32>, vector<32x128xf32>, vector<1x128xf32> -> vector<1x128xf32>
    %53 = arith.addf %51, %52 : vector<1x128xf32>
    %54 = math.tanh %53 : vector<1x128xf32>
    %cst_23 = arith.constant 5.000000e-01 : f32
    %55 = vector.broadcast %cst_23 : f32 to vector<1x128xf32>
    %56 = arith.mulf %55, %54 : vector<1x128xf32>
    %cst_24 = arith.constant 5.000000e-01 : f32
    %57 = vector.broadcast %cst_24 : f32 to vector<1x128xf32>
    %58 = arith.addf %56, %57 : vector<1x128xf32>
    %59 = vector.extract_strided_slice %58 {offsets = [0, 0], sizes = [1, 32], strides = [1, 1]} : vector<1x128xf32> to vector<1x32xf32>
    %60 = vector.extract_strided_slice %58 {offsets = [0, 32], sizes = [1, 32], strides = [1, 1]} : vector<1x128xf32> to vector<1x32xf32>
    %61 = vector.extract_strided_slice %54 {offsets = [0, 64], sizes = [1, 32], strides = [1, 1]} : vector<1x128xf32> to vector<1x32xf32>
    %62 = vector.extract_strided_slice %58 {offsets = [0, 96], sizes = [1, 32], strides = [1, 1]} : vector<1x128xf32> to vector<1x32xf32>
    %63 = arith.mulf %60, %45 : vector<1x32xf32>
    %64 = arith.mulf %59, %61 : vector<1x32xf32>
    %65 = arith.addf %63, %64 : vector<1x32xf32>
    %66 = math.tanh %65 : vector<1x32xf32>
    %67 = arith.mulf %62, %66 : vector<1x32xf32>
    %68 = arith.index_cast %c2_i32 : i32 to index
    %c0_25 = arith.constant 0 : index
    %69 = vector.load %arg14[%68, %c0_25] : memref<8x32xf32, #tpu.memory_space<vmem>>, vector<1x32xf32>
    tpu.vector_store %arg14[%68, %c0_25], %67 {strides = array<i32>} : memref<8x32xf32, #tpu.memory_space<vmem>>, vector<1x32xf32>,
    %c3_i32 = arith.constant 3 : i32
    %70 = arith.index_cast %c3_i32 : i32 to index
    %c0_26 = arith.constant 0 : index
    %71 = vector.load %arg13[%70, %c0_26] : memref<8x128xf32, #tpu.memory_space<vmem>>, vector<1x128xf32>
    %cst_27 = arith.constant dense<0.000000e+00> : vector<1x128xf32>
    %72 = tpu.matmul %67, %0, %cst_27 {dimension_numbers = #tpu.dot_dimension_numbers<[1], [0], [0], [1], [0, 0, 1, 1], [], []>} : vector<1x32xf32>, vector<32x128xf32>, vector<1x128xf32> -> vector<1x128xf32>
    %73 = arith.addf %71, %72 : vector<1x128xf32>
    %74 = math.tanh %73 : vector<1x128xf32>
    %cst_28 = arith.constant 5.000000e-01 : f32
    %75 = vector.broadcast %cst_28 : f32 to vector<1x128xf32>
    %76 = arith.mulf %75, %74 : vector<1x128xf32>
    %cst_29 = arith.constant 5.000000e-01 : f32
    %77 = vector.broadcast %cst_29 : f32 to vector<1x128xf32>
    %78 = arith.addf %76, %77 : vector<1x128xf32>
    %79 = vector.extract_strided_slice %78 {offsets = [0, 0], sizes = [1, 32], strides = [1, 1]} : vector<1x128xf32> to vector<1x32xf32>
    %80 = vector.extract_strided_slice %78 {offsets = [0, 32], sizes = [1, 32], strides = [1, 1]} : vector<1x128xf32> to vector<1x32xf32>
    %81 = vector.extract_strided_slice %74 {offsets = [0, 64], sizes = [1, 32], strides = [1, 1]} : vector<1x128xf32> to vector<1x32xf32>
    %82 = vector.extract_strided_slice %78 {offsets = [0, 96], sizes = [1, 32], strides = [1, 1]} : vector<1x128xf32> to vector<1x32xf32>
    %83 = arith.mulf %80, %65 : vector<1x32xf32>
    %84 = arith.mulf %79, %81 : vector<1x32xf32>
    %85 = arith.addf %83, %84 : vector<1x32xf32>
    %86 = math.tanh %85 : vector<1x32xf32>
    %87 = arith.mulf %82, %86 : vector<1x32xf32>
    %88 = arith.index_cast %c3_i32 : i32 to index
    %c0_30 = arith.constant 0 : index
    %89 = vector.load %arg14[%88, %c0_30] : memref<8x32xf32, #tpu.memory_space<vmem>>, vector<1x32xf32>
    tpu.vector_store %arg14[%88, %c0_30], %87 {strides = array<i32>} : memref<8x32xf32, #tpu.memory_space<vmem>>, vector<1x32xf32>,
    %c4_i32 = arith.constant 4 : i32
    %90 = arith.index_cast %c4_i32 : i32 to index
    %c0_31 = arith.constant 0 : index
    %91 = vector.load %arg13[%90, %c0_31] : memref<8x128xf32, #tpu.memory_space<vmem>>, vector<1x128xf32>
    %cst_32 = arith.constant dense<0.000000e+00> : vector<1x128xf32>
    %92 = tpu.matmul %87, %0, %cst_32 {dimension_numbers = #tpu.dot_dimension_numbers<[1], [0], [0], [1], [0, 0, 1, 1], [], []>} : vector<1x32xf32>, vector<32x128xf32>, vector<1x128xf32> -> vector<1x128xf32>
    %93 = arith.addf %91, %92 : vector<1x128xf32>
    %94 = math.tanh %93 : vector<1x128xf32>
    %cst_33 = arith.constant 5.000000e-01 : f32
    %95 = vector.broadcast %cst_33 : f32 to vector<1x128xf32>
    %96 = arith.mulf %95, %94 : vector<1x128xf32>
    %cst_34 = arith.constant 5.000000e-01 : f32
    %97 = vector.broadcast %cst_34 : f32 to vector<1x128xf32>
    %98 = arith.addf %96, %97 : vector<1x128xf32>
    %99 = vector.extract_strided_slice %98 {offsets = [0, 0], sizes = [1, 32], strides = [1, 1]} : vector<1x128xf32> to vector<1x32xf32>
    %100 = vector.extract_strided_slice %98 {offsets = [0, 32], sizes = [1, 32], strides = [1, 1]} : vector<1x128xf32> to vector<1x32xf32>
    %101 = vector.extract_strided_slice %94 {offsets = [0, 64], sizes = [1, 32], strides = [1, 1]} : vector<1x128xf32> to vector<1x32xf32>
    %102 = vector.extract_strided_slice %98 {offsets = [0, 96], sizes = [1, 32], strides = [1, 1]} : vector<1x128xf32> to vector<1x32xf32>
    %103 = arith.mulf %100, %85 : vector<1x32xf32>
    %104 = arith.mulf %99, %101 : vector<1x32xf32>
    %105 = arith.addf %103, %104 : vector<1x32xf32>
    %106 = math.tanh %105 : vector<1x32xf32>
    %107 = arith.mulf %102, %106 : vector<1x32xf32>
    %108 = arith.index_cast %c4_i32 : i32 to index
    %c0_35 = arith.constant 0 : index
    %109 = vector.load %arg14[%108, %c0_35] : memref<8x32xf32, #tpu.memory_space<vmem>>, vector<1x32xf32>
    tpu.vector_store %arg14[%108, %c0_35], %107 {strides = array<i32>} : memref<8x32xf32, #tpu.memory_space<vmem>>, vector<1x32xf32>,
    %c5_i32 = arith.constant 5 : i32
    %110 = arith.index_cast %c5_i32 : i32 to index
    %c0_36 = arith.constant 0 : index
    %111 = vector.load %arg13[%110, %c0_36] : memref<8x128xf32, #tpu.memory_space<vmem>>, vector<1x128xf32>
    %cst_37 = arith.constant dense<0.000000e+00> : vector<1x128xf32>
    %112 = tpu.matmul %107, %0, %cst_37 {dimension_numbers = #tpu.dot_dimension_numbers<[1], [0], [0], [1], [0, 0, 1, 1], [], []>} : vector<1x32xf32>, vector<32x128xf32>, vector<1x128xf32> -> vector<1x128xf32>
    %113 = arith.addf %111, %112 : vector<1x128xf32>
    %114 = math.tanh %113 : vector<1x128xf32>
    %cst_38 = arith.constant 5.000000e-01 : f32
    %115 = vector.broadcast %cst_38 : f32 to vector<1x128xf32>
    %116 = arith.mulf %115, %114 : vector<1x128xf32>
    %cst_39 = arith.constant 5.000000e-01 : f32
    %117 = vector.broadcast %cst_39 : f32 to vector<1x128xf32>
    %118 = arith.addf %116, %117 : vector<1x128xf32>
    %119 = vector.extract_strided_slice %118 {offsets = [0, 0], sizes = [1, 32], strides = [1, 1]} : vector<1x128xf32> to vector<1x32xf32>
    %120 = vector.extract_strided_slice %118 {offsets = [0, 32], sizes = [1, 32], strides = [1, 1]} : vector<1x128xf32> to vector<1x32xf32>
    %121 = vector.extract_strided_slice %114 {offsets = [0, 64], sizes = [1, 32], strides = [1, 1]} : vector<1x128xf32> to vector<1x32xf32>
    %122 = vector.extract_strided_slice %118 {offsets = [0, 96], sizes = [1, 32], strides = [1, 1]} : vector<1x128xf32> to vector<1x32xf32>
    %123 = arith.mulf %120, %105 : vector<1x32xf32>
    %124 = arith.mulf %119, %121 : vector<1x32xf32>
    %125 = arith.addf %123, %124 : vector<1x32xf32>
    %126 = math.tanh %125 : vector<1x32xf32>
    %127 = arith.mulf %122, %126 : vector<1x32xf32>
    %128 = arith.index_cast %c5_i32 : i32 to index
    %c0_40 = arith.constant 0 : index
    %129 = vector.load %arg14[%128, %c0_40] : memref<8x32xf32, #tpu.memory_space<vmem>>, vector<1x32xf32>
    tpu.vector_store %arg14[%128, %c0_40], %127 {strides = array<i32>} : memref<8x32xf32, #tpu.memory_space<vmem>>, vector<1x32xf32>,
    %c6_i32 = arith.constant 6 : i32
    %130 = arith.index_cast %c6_i32 : i32 to index
    %c0_41 = arith.constant 0 : index
    %131 = vector.load %arg13[%130, %c0_41] : memref<8x128xf32, #tpu.memory_space<vmem>>, vector<1x128xf32>
    %cst_42 = arith.constant dense<0.000000e+00> : vector<1x128xf32>
    %132 = tpu.matmul %127, %0, %cst_42 {dimension_numbers = #tpu.dot_dimension_numbers<[1], [0], [0], [1], [0, 0, 1, 1], [], []>} : vector<1x32xf32>, vector<32x128xf32>, vector<1x128xf32> -> vector<1x128xf32>
    %133 = arith.addf %131, %132 : vector<1x128xf32>
    %134 = math.tanh %133 : vector<1x128xf32>
    %cst_43 = arith.constant 5.000000e-01 : f32
    %135 = vector.broadcast %cst_43 : f32 to vector<1x128xf32>
    %136 = arith.mulf %135, %134 : vector<1x128xf32>
    %cst_44 = arith.constant 5.000000e-01 : f32
    %137 = vector.broadcast %cst_44 : f32 to vector<1x128xf32>
    %138 = arith.addf %136, %137 : vector<1x128xf32>
    %139 = vector.extract_strided_slice %138 {offsets = [0, 0], sizes = [1, 32], strides = [1, 1]} : vector<1x128xf32> to vector<1x32xf32>
    %140 = vector.extract_strided_slice %138 {offsets = [0, 32], sizes = [1, 32], strides = [1, 1]} : vector<1x128xf32> to vector<1x32xf32>
    %141 = vector.extract_strided_slice %134 {offsets = [0, 64], sizes = [1, 32], strides = [1, 1]} : vector<1x128xf32> to vector<1x32xf32>
    %142 = vector.extract_strided_slice %138 {offsets = [0, 96], sizes = [1, 32], strides = [1, 1]} : vector<1x128xf32> to vector<1x32xf32>
    %143 = arith.mulf %140, %125 : vector<1x32xf32>
    %144 = arith.mulf %139, %141 : vector<1x32xf32>
    %145 = arith.addf %143, %144 : vector<1x32xf32>
    %146 = math.tanh %145 : vector<1x32xf32>
    %147 = arith.mulf %142, %146 : vector<1x32xf32>
    %148 = arith.index_cast %c6_i32 : i32 to index
    %c0_45 = arith.constant 0 : index
    %149 = vector.load %arg14[%148, %c0_45] : memref<8x32xf32, #tpu.memory_space<vmem>>, vector<1x32xf32>
    tpu.vector_store %arg14[%148, %c0_45], %147 {strides = array<i32>} : memref<8x32xf32, #tpu.memory_space<vmem>>, vector<1x32xf32>,
    %c7_i32 = arith.constant 7 : i32
    %150 = arith.index_cast %c7_i32 : i32 to index
    %c0_46 = arith.constant 0 : index
    %151 = vector.load %arg13[%150, %c0_46] : memref<8x128xf32, #tpu.memory_space<vmem>>, vector<1x128xf32>
    %cst_47 = arith.constant dense<0.000000e+00> : vector<1x128xf32>
    %152 = tpu.matmul %147, %0, %cst_47 {dimension_numbers = #tpu.dot_dimension_numbers<[1], [0], [0], [1], [0, 0, 1, 1], [], []>} : vector<1x32xf32>, vector<32x128xf32>, vector<1x128xf32> -> vector<1x128xf32>
    %153 = arith.addf %151, %152 : vector<1x128xf32>
    %154 = math.tanh %153 : vector<1x128xf32>
    %cst_48 = arith.constant 5.000000e-01 : f32
    %155 = vector.broadcast %cst_48 : f32 to vector<1x128xf32>
    %156 = arith.mulf %155, %154 : vector<1x128xf32>
    %cst_49 = arith.constant 5.000000e-01 : f32
    %157 = vector.broadcast %cst_49 : f32 to vector<1x128xf32>
    %158 = arith.addf %156, %157 : vector<1x128xf32>
    %159 = vector.extract_strided_slice %158 {offsets = [0, 0], sizes = [1, 32], strides = [1, 1]} : vector<1x128xf32> to vector<1x32xf32>
    %160 = vector.extract_strided_slice %158 {offsets = [0, 32], sizes = [1, 32], strides = [1, 1]} : vector<1x128xf32> to vector<1x32xf32>
    %161 = vector.extract_strided_slice %154 {offsets = [0, 64], sizes = [1, 32], strides = [1, 1]} : vector<1x128xf32> to vector<1x32xf32>
    %162 = vector.extract_strided_slice %158 {offsets = [0, 96], sizes = [1, 32], strides = [1, 1]} : vector<1x128xf32> to vector<1x32xf32>
    %163 = arith.mulf %160, %145 : vector<1x32xf32>
    %164 = arith.mulf %159, %161 : vector<1x32xf32>
    %165 = arith.addf %163, %164 : vector<1x32xf32>
    %166 = math.tanh %165 : vector<1x32xf32>
    %167 = arith.mulf %162, %166 : vector<1x32xf32>
    %168 = arith.index_cast %c7_i32 : i32 to index
    %c0_50 = arith.constant 0 : index
    %169 = vector.load %arg14[%168, %c0_50] : memref<8x32xf32, #tpu.memory_space<vmem>>, vector<1x32xf32>
    tpu.vector_store %arg14[%168, %c0_50], %167 {strides = array<i32>} : memref<8x32xf32, #tpu.memory_space<vmem>>, vector<1x32xf32>,
    %c8_i32 = arith.constant 8 : i32
    %c0_51 = arith.constant 0 : index
    %c0_52 = arith.constant 0 : index
    %170 = vector.load %arg14[%c0_51, %c0_52] : memref<8x32xf32, #tpu.memory_space<vmem>>, vector<8x32xf32>
    %c0_53 = arith.constant 0 : index
    %c0_54 = arith.constant 0 : index
    %171 = vector.load %arg7[%c0_53, %c0_54] : memref<32x48xf32, #tpu.memory_space<vmem>>, vector<32x48xf32>
    %cst_55 = arith.constant dense<0.000000e+00> : vector<8x48xf32>
    %172 = tpu.matmul %170, %171, %cst_55 {dimension_numbers = #tpu.dot_dimension_numbers<[1], [0], [0], [1], [0, 0, 1, 1], [], []>} : vector<8x32xf32>, vector<32x48xf32>, vector<8x48xf32> -> vector<8x48xf32>
    %c0_56 = arith.constant 0 : index
    %c0_57 = arith.constant 0 : index
    %173 = vector.load %arg8[%c0_56, %c0_57] : memref<1x48xf32, #tpu.memory_space<vmem>>, vector<1x48xf32>
    %174 = vector.broadcast %173 : vector<1x48xf32> to vector<8x48xf32>
    %175 = arith.addf %172, %174 : vector<8x48xf32>
    %176 = vector.extract_strided_slice %175 {offsets = [0, 0], sizes = [8, 16], strides = [1, 1]} : vector<8x48xf32> to vector<8x16xf32>
    %177 = vector.extract_strided_slice %175 {offsets = [0, 16], sizes = [8, 16], strides = [1, 1]} : vector<8x48xf32> to vector<8x16xf32>
    %178 = vector.extract_strided_slice %175 {offsets = [0, 32], sizes = [8, 16], strides = [1, 1]} : vector<8x48xf32> to vector<8x16xf32>
    %c0_58 = arith.constant 0 : index
    %c0_59 = arith.constant 0 : index
    %c0_60 = arith.constant 0 : index
    %179 = vector.load %arg5[%c0_58, %c0_59, %c0_60] : memref<1x8x8xf32, #tpu.memory_space<vmem>>, vector<1x8x8xf32>
    %180 = vector.shape_cast %179 : vector<1x8x8xf32> to vector<8x8xf32>
    %cst_61 = arith.constant dense<0.000000e+00> : vector<8x16xf32>
    %181 = tpu.matmul %180, %176, %cst_61 {dimension_numbers = #tpu.dot_dimension_numbers<[1], [0], [0], [1], [0, 0, 1, 1], [], []>} : vector<8x8xf32>, vector<8x16xf32>, vector<8x16xf32> -> vector<8x16xf32>
    %c0_62 = arith.constant 0 : index
    %c0_63 = arith.constant 0 : index
    %c0_64 = arith.constant 0 : index
    %182 = vector.load %arg6[%c0_62, %c0_63, %c0_64] : memref<1x8x8xf32, #tpu.memory_space<vmem>>, vector<1x8x8xf32>
    %183 = vector.shape_cast %182 : vector<1x8x8xf32> to vector<8x8xf32>
    %cst_65 = arith.constant dense<0.000000e+00> : vector<8x16xf32>
    %184 = tpu.matmul %183, %177, %cst_65 {dimension_numbers = #tpu.dot_dimension_numbers<[1], [0], [0], [1], [0, 0, 1, 1], [], []>} : vector<8x8xf32>, vector<8x16xf32>, vector<8x16xf32> -> vector<8x16xf32>
    %185 = arith.addf %178, %181 : vector<8x16xf32>
    %186 = arith.addf %185, %184 : vector<8x16xf32>
    %187 = math.tanh %186 : vector<8x16xf32>
    %c0_66 = arith.constant 0 : index
    %c0_67 = arith.constant 0 : index
    %188 = vector.load %arg9[%c0_66, %c0_67] : memref<16x128xf32, #tpu.memory_space<vmem>>, vector<16x128xf32>
    %cst_68 = arith.constant dense<0.000000e+00> : vector<8x128xf32>
    %189 = tpu.matmul %187, %188, %cst_68 {dimension_numbers = #tpu.dot_dimension_numbers<[1], [0], [0], [1], [0, 0, 1, 1], [], []>} : vector<8x16xf32>, vector<16x128xf32>, vector<8x128xf32> -> vector<8x128xf32>
    %c0_69 = arith.constant 0 : index
    %c0_70 = arith.constant 0 : index
    %190 = vector.load %arg10[%c0_69, %c0_70] : memref<1x128xf32, #tpu.memory_space<vmem>>, vector<1x128xf32>
    %191 = vector.broadcast %190 : vector<1x128xf32> to vector<8x128xf32>
    %192 = arith.addf %189, %191 : vector<8x128xf32>
    %cst_71 = arith.constant dense<0xFF800000> : vector<8xf32>
    %193 = vector.multi_reduction <maximumf>, %192, %cst_71 [1] : vector<8x128xf32> to vector<8xf32>
    %194 = vector.shape_cast %193 : vector<8xf32> to vector<8x1xf32>
    %195 = vector.broadcast %194 : vector<8x1xf32> to vector<8x128xf32>
    %196 = arith.subf %192, %195 : vector<8x128xf32>
    %197 = math.exp %196 : vector<8x128xf32>
    %cst_72 = arith.constant dense<0.000000e+00> : vector<8xf32>
    %198 = vector.multi_reduction <add>, %197, %cst_72 [1] : vector<8x128xf32> to vector<8xf32>
    %199 = vector.shape_cast %198 : vector<8xf32> to vector<8x1xf32>
    %200 = math.log %199 : vector<8x1xf32>
    %201 = tpu.iota {dimensions = array<i32: 1>} : vector<8x128xi32>
    %c0_73 = arith.constant 0 : index
    %c0_74 = arith.constant 0 : index
    %c0_75 = arith.constant 0 : index
    %202 = vector.load %arg11[%c0_73, %c0_74, %c0_75] : memref<1x8x1xi32, #tpu.memory_space<vmem>>, vector<1x8x1xi32>
    %203 = vector.shape_cast %202 : vector<1x8x1xi32> to vector<8x1xi32>
    %204 = vector.broadcast %203 : vector<8x1xi32> to vector<8x128xi32>
    %205 = arith.cmpi eq, %201, %204 : vector<8x128xi32>
    %206 = arith.extui %205 : vector<8x128xi1> to vector<8x128xi32>
    %207 = arith.sitofp %206 : vector<8x128xi32> to vector<8x128xf32>
    %208 = arith.mulf %207, %196 : vector<8x128xf32>
    %cst_76 = arith.constant dense<0.000000e+00> : vector<8xf32>
    %209 = vector.multi_reduction <add>, %208, %cst_76 [1] : vector<8x128xf32> to vector<8xf32>
    %210 = vector.shape_cast %209 : vector<8xf32> to vector<8x1xf32>
    %211 = arith.subf %200, %210 : vector<8x1xf32>
    %cst_77 = arith.constant dense<0.000000e+00> : vector<1xf32>
    %212 = vector.multi_reduction <add>, %211, %cst_77 [0] : vector<8x1xf32> to vector<1xf32>
    %213 = vector.shape_cast %212 : vector<1xf32> to vector<1x1xf32>
    %cst_78 = arith.constant 1.250000e-01 : f32
    %214 = vector.broadcast %cst_78 : f32 to vector<1x1xf32>
    %215 = arith.mulf %213, %214 : vector<1x1xf32>
    %c0_79 = arith.constant 0 : index
    %c0_80 = arith.constant 0 : index
    %c0_81 = arith.constant 0 : index
    %216 = vector.load %arg12[%c0_79, %c0_80, %c0_81] : memref<1x1x1xf32, #tpu.memory_space<vmem>>, vector<1x1x1xf32>
    %217 = vector.shape_cast %216 : vector<1x1x1xf32> to vector<1x1xf32>
    %218 = vector.shape_cast %215 : vector<1x1xf32> to vector<1x1x1xf32>
    tpu.vector_store %arg12[%c0_79, %c0_80, %c0_81], %218 {strides = array<i32>} : memref<1x1x1xf32, #tpu.memory_space<vmem>>, vector<1x1x1xf32>,
    return
  }
  func.func @transform_0(%arg0: i32) -> (i32, i32, i32) {
    %c0_i32 = arith.constant 0 : i32
    %c0_i32_0 = arith.constant 0 : i32
    %c0_i32_1 = arith.constant 0 : i32
    return %arg0, %c0_i32, %c0_i32_0 : i32, i32, i32
  }
  func.func @transform_1(%arg0: i32) -> (i32, i32) {
    %c0_i32 = arith.constant 0 : i32
    %c0_i32_0 = arith.constant 0 : i32
    %c0_i32_1 = arith.constant 0 : i32
    return %c0_i32, %c0_i32_0 : i32, i32
  }
  func.func @transform_2(%arg0: i32) -> (i32, i32) {
    %c0_i32 = arith.constant 0 : i32
    %c0_i32_0 = arith.constant 0 : i32
    %c0_i32_1 = arith.constant 0 : i32
    return %c0_i32, %c0_i32_0 : i32, i32
  }
  func.func @transform_3(%arg0: i32) -> (i32, i32) {
    %c0_i32 = arith.constant 0 : i32
    %c0_i32_0 = arith.constant 0 : i32
    %c0_i32_1 = arith.constant 0 : i32
    return %c0_i32, %c0_i32_0 : i32, i32
  }
  func.func @transform_4(%arg0: i32) -> (i32, i32, i32) {
    %c0_i32 = arith.constant 0 : i32
    %c0_i32_0 = arith.constant 0 : i32
    %c0_i32_1 = arith.constant 0 : i32
    return %arg0, %c0_i32, %c0_i32_0 : i32, i32, i32
  }
  func.func @transform_5(%arg0: i32) -> (i32, i32, i32) {
    %c0_i32 = arith.constant 0 : i32
    %c0_i32_0 = arith.constant 0 : i32
    %c0_i32_1 = arith.constant 0 : i32
    return %arg0, %c0_i32, %c0_i32_0 : i32, i32, i32
  }
  func.func @transform_6(%arg0: i32) -> (i32, i32) {
    %c0_i32 = arith.constant 0 : i32
    %c0_i32_0 = arith.constant 0 : i32
    %c0_i32_1 = arith.constant 0 : i32
    return %c0_i32, %c0_i32_0 : i32, i32
  }
  func.func @transform_7(%arg0: i32) -> (i32, i32) {
    %c0_i32 = arith.constant 0 : i32
    %c0_i32_0 = arith.constant 0 : i32
    %c0_i32_1 = arith.constant 0 : i32
    return %c0_i32, %c0_i32_0 : i32, i32
  }
  func.func @transform_8(%arg0: i32) -> (i32, i32) {
    %c0_i32 = arith.constant 0 : i32
    %c0_i32_0 = arith.constant 0 : i32
    %c0_i32_1 = arith.constant 0 : i32
    return %c0_i32, %c0_i32_0 : i32, i32
  }
  func.func @transform_9(%arg0: i32) -> (i32, i32) {
    %c0_i32 = arith.constant 0 : i32
    %c0_i32_0 = arith.constant 0 : i32
    %c0_i32_1 = arith.constant 0 : i32
    return %c0_i32, %c0_i32_0 : i32, i32
  }
  func.func @transform_10(%arg0: i32) -> (i32, i32, i32) {
    %c0_i32 = arith.constant 0 : i32
    %c0_i32_0 = arith.constant 0 : i32
    %c0_i32_1 = arith.constant 0 : i32
    return %arg0, %c0_i32, %c0_i32_0 : i32, i32, i32
  }
  func.func @transform_11(%arg0: i32) -> (i32, i32, i32) {
    %c0_i32 = arith.constant 0 : i32
    %c0_i32_0 = arith.constant 0 : i32
    %c0_i32_1 = arith.constant 0 : i32
    return %arg0, %c0_i32, %c0_i32_0 : i32, i32, i32
  }
}

</mosaic_0001>

<llo_original>
// kernel: decoder_forward_batch.1
$region0: #{decoder_forward_batch.1}
  #allocation0 [shape = 'u32[]', space=smem, size = 0x4, offset = 0x4, fixed_abs, tag = 'smem constant byte address 0x4 - core index']
  #allocation1 [shape = 'u32[144,128]{1,0:T(1,128)}', space=vmem, size = 0x12000, scoped, tag = 'internal scratch']
  #allocation2 [shape = 'f32[8,128]{1,0:T(8,128)}', space=vmem, size = 0x1000, scoped, tag = 'scratch operand']
  #allocation3 [shape = 'f32[8,32]{1,0:T(8,128)}', space=vmem, size = 0x1000, scoped, tag = 'scratch operand']
  %s0 = inlined_call_operand.vmem [shape: f32[2,8,32], index: 0, kind: input, shape index: {}]
  %s1 = inlined_call_operand.vmem [shape: f32[32,128], index: 1, kind: input, shape index: {}]
  %s2 = inlined_call_operand.vmem [shape: f32[32,128], index: 2, kind: input, shape index: {}]
  %s3 = inlined_call_operand.vmem [shape: f32[1,128], index: 3, kind: input, shape index: {}]
  %s4 = inlined_call_operand.vmem [shape: f32[2,8,8], index: 4, kind: input, shape index: {}]
  %s5 = inlined_call_operand.vmem [shape: f32[2,8,8], index: 5, kind: input, shape index: {}]
  %s6 = inlined_call_operand.vmem [shape: f32[32,48], index: 6, kind: input, shape index: {}]
  %s7 = inlined_call_operand.vmem [shape: f32[1,48], index: 7, kind: input, shape index: {}]
  %s8 = inlined_call_operand.vmem [shape: f32[16,128], index: 8, kind: input, shape index: {}]
  %s9 = inlined_call_operand.vmem [shape: f32[1,128], index: 9, kind: input, shape index: {}]
  %s10 = inlined_call_operand.vmem [shape: s32[2,8,1], index: 10, kind: input, shape index: {}]
  %s11 = inlined_call_operand.vmem [shape: f32[2,1,1], index: 11, kind: output, shape index: {}]
  %s12 = sld [smem:[#allocation0]]
  $region77: #{decoder_forward_batch.1} parent=0
    _
  %s14 = ssub.s32 1, %s12
  %s15 = scalar_select 0, %s14, %s12
  loop: start=0, step=1, limit=4
  $region2: #{decoder_forward_batch.1} parent=0 // loop_pre_header
    _
  $region3: #{decoder_forward_batch.1} parent=0 // loop_header
    %s17 = sphi 0, %s21
    %p18 = scmp.ge.s32.totalorder %s17, 4
    %s27 = sphi 0, %s29
    %s30 = sphi 0, %s27
    %s31 = sphi 0, %s30
    %s47 = sphi 0, %s31
    %s51 = sphi 0, %s51
    %s53 = sphi 0, %s51
    %s54 = sphi 0, %s53
    %s68 = sphi 0, %s54
    %s72 = sphi 0, %s72
    %s74 = sphi 0, %s72
    %s75 = sphi 0, %s74
    %s89 = sphi 0, %s75
    %s93 = sphi 0, %s93
    %s95 = sphi 0, %s93
    %s96 = sphi 0, %s95
    %s110 = sphi 0, %s96
    %s116 = sphi 0, %s118
    %s119 = sphi 0, %s116
    %s120 = sphi 0, %s119
    %s136 = sphi 0, %s120
    %s142 = sphi 0, %s144
    %s145 = sphi 0, %s142
    %s146 = sphi 0, %s145
    %s162 = sphi 0, %s146
    %s166 = sphi 0, %s166
    %s168 = sphi 0, %s166
    %s169 = sphi 0, %s168
    %s183 = sphi 0, %s169
    %s187 = sphi 0, %s187
    %s189 = sphi 0, %s187
    %s190 = sphi 0, %s189
    %s204 = sphi 0, %s190
    %s208 = sphi 0, %s208
    %s210 = sphi 0, %s208
    %s211 = sphi 0, %s210
    %s225 = sphi 0, %s211
    %s229 = sphi 0, %s229
    %s231 = sphi 0, %s229
    %s232 = sphi 0, %s231
    %s246 = sphi 0, %s232
    %s252 = sphi 0, %s254
    %s255 = sphi 0, %s252
    %s256 = sphi 0, %s255
    %s272 = sphi 0, %s256
    %s278 = sphi 0, %s280
    %s281 = sphi 0, %s278
    %s282 = sphi 0, %s281
    %s298 = sphi 0, %s282
  $region4: #{decoder_forward_batch.1} parent=0 // loop_header_branch
    %20 = sbr.rel (%p18) target = $region8
  $region5: #{decoder_forward_batch.1} parent=0 // loop_body
    %s22 = ssub.s32 %s17, 1
    %s23 = ssub.s32 %s17, 2
    %s24 = sadd.s32 %s17, 1
    %s25 = ssub.s32 %s17, %s24
    %p26 = scmp.eq.s32.totalorder %s25, 0
    %s28 = sadd.s32 %s27, 1
    %s29 = scalar_select %p26, %s27, %s28
    %p32 = pneg %p26
    %p33 = scmp.eq.s32.totalorder %s17, 1
    %p34 = por %p32, %p33
    %p35 = scmp.ne.s32.totalorder %s27, %s30
    %p36 = scmp.eq.s32.totalorder %s17, 0
    %p37 = por %p35, %p36
    %p38 = scmp.ne.s32.totalorder %s27, %s30
    %p39 = scmp.eq.s32.totalorder %s22, 1
    %p40 = por %p38, %p39
    %p41 = scmp.ne.s32.totalorder %s30, %s31
    %p42 = scmp.eq.s32.totalorder %s22, 0
    %p43 = por %p41, %p42
    %p44 = scmp.ne.s32.totalorder %s30, %s31
    %p45 = scmp.eq.s32.totalorder %s23, 1
    %p46 = por %p44, %p45
    %p48 = scmp.ne.s32.totalorder %s31, %s47
    %p49 = scmp.eq.s32.totalorder %s23, 0
    %p50 = por %p48, %p49
    %s52 = sadd.s32 %s51, 1
    %p55 = scmp.eq.s32.totalorder %s17, 1
    %p56 = scmp.ne.s32.totalorder %s51, %s53
    %p57 = scmp.eq.s32.totalorder %s17, 0
    %p58 = por %p56, %p57
    %p59 = scmp.ne.s32.totalorder %s51, %s53
    %p60 = scmp.eq.s32.totalorder %s22, 1
    %p61 = por %p59, %p60
    %p62 = scmp.ne.s32.totalorder %s53, %s54
    %p63 = scmp.eq.s32.totalorder %s22, 0
    %p64 = por %p62, %p63
    %p65 = scmp.ne.s32.totalorder %s53, %s54
    %p66 = scmp.eq.s32.totalorder %s23, 1
    %p67 = por %p65, %p66
    %p69 = scmp.ne.s32.totalorder %s54, %s68
    %p70 = scmp.eq.s32.totalorder %s23, 0
    %p71 = por %p69, %p70
    %s73 = sadd.s32 %s72, 1
    %p76 = scmp.eq.s32.totalorder %s17, 1
    %p77 = scmp.ne.s32.totalorder %s72, %s74
    %p78 = scmp.eq.s32.totalorder %s17, 0
    %p79 = por %p77, %p78
    %p80 = scmp.ne.s32.totalorder %s72, %s74
    %p81 = scmp.eq.s32.totalorder %s22, 1
    %p82 = por %p80, %p81
    %p83 = scmp.ne.s32.totalorder %s74, %s75
    %p84 = scmp.eq.s32.totalorder %s22, 0
    %p85 = por %p83, %p84
    %p86 = scmp.ne.s32.totalorder %s74, %s75
    %p87 = scmp.eq.s32.totalorder %s23, 1
    %p88 = por %p86, %p87
    %p90 = scmp.ne.s32.totalorder %s75, %s89
    %p91 = scmp.eq.s32.totalorder %s23, 0
    %p92 = por %p90, %p91
    %s94 = sadd.s32 %s93, 1
    %p97 = scmp.eq.s32.totalorder %s17, 1
    %p98 = scmp.ne.s32.totalorder %s93, %s95
    %p99 = scmp.eq.s32.totalorder %s17, 0
    %p100 = por %p98, %p99
    %p101 = scmp.ne.s32.totalorder %s93, %s95
    %p102 = scmp.eq.s32.totalorder %s22, 1
    %p103 = por %p101, %p102
    %p104 = scmp.ne.s32.totalorder %s95, %s96
    %p105 = scmp.eq.s32.totalorder %s22, 0
    %p106 = por %p104, %p105
    %p107 = scmp.ne.s32.totalorder %s95, %s96
    %p108 = scmp.eq.s32.totalorder %s23, 1
    %p109 = por %p107, %p108
    %p111 = scmp.ne.s32.totalorder %s96, %s110
    %p112 = scmp.eq.s32.totalorder %s23, 0
    %p113 = por %p111, %p112
    %s114 = ssub.s32 %s17, %s24
    %p115 = scmp.eq.s32.totalorder %s114, 0
    %s117 = sadd.s32 %s116, 1
    %s118 = scalar_select %p115, %s116, %s117
    %p121 = pneg %p115
    %p122 = scmp.eq.s32.totalorder %s17, 1
    %p123 = por %p121, %p122
    %p124 = scmp.ne.s32.totalorder %s116, %s119
    %p125 = scmp.eq.s32.totalorder %s17, 0
    %p126 = por %p124, %p125
    %p127 = scmp.ne.s32.totalorder %s116, %s119
    %p128 = scmp.eq.s32.totalorder %s22, 1
    %p129 = por %p127, %p128
    %p130 = scmp.ne.s32.totalorder %s119, %s120
    %p131 = scmp.eq.s32.totalorder %s22, 0
    %p132 = por %p130, %p131
    %p133 = scmp.ne.s32.totalorder %s119, %s120
    %p134 = scmp.eq.s32.totalorder %s23, 1
    %p135 = por %p133, %p134
    %p137 = scmp.ne.s32.totalorder %s120, %s136
    %p138 = scmp.eq.s32.totalorder %s23, 0
    %p139 = por %p137, %p138
    %s140 = ssub.s32 %s17, %s24
    %p141 = scmp.eq.s32.totalorder %s140, 0
    %s143 = sadd.s32 %s142, 1
    %s144 = scalar_select %p141, %s142, %s143
    %p147 = pneg %p141
    %p148 = scmp.eq.s32.totalorder %s17, 1
    %p149 = por %p147, %p148
    %p150 = scmp.ne.s32.totalorder %s142, %s145
    %p151 = scmp.eq.s32.totalorder %s17, 0
    %p152 = por %p150, %p151
    %p153 = scmp.ne.s32.totalorder %s142, %s145
    %p154 = scmp.eq.s32.totalorder %s22, 1
    %p155 = por %p153, %p154
    %p156 = scmp.ne.s32.totalorder %s145, %s146
    %p157 = scmp.eq.s32.totalorder %s22, 0
    %p158 = por %p156, %p157
    %p159 = scmp.ne.s32.totalorder %s145, %s146
    %p160 = scmp.eq.s32.totalorder %s23, 1
    %p161 = por %p159, %p160
    %p163 = scmp.ne.s32.totalorder %s146, %s162
    %p164 = scmp.eq.s32.totalorder %s23, 0
    %p165 = por %p163, %p164
    %s167 = sadd.s32 %s166, 1
    %p170 = scmp.eq.s32.totalorder %s17, 1
    %p171 = scmp.ne.s32.totalorder %s166, %s168
    %p172 = scmp.eq.s32.totalorder %s17, 0
    %p173 = por %p171, %p172
    %p174 = scmp.ne.s32.totalorder %s166, %s168
    %p175 = scmp.eq.s32.totalorder %s22, 1
    %p176 = por %p174, %p175
    %p177 = scmp.ne.s32.totalorder %s168, %s169
    %p178 = scmp.eq.s32.totalorder %s22, 0
    %p179 = por %p177, %p178
    %p180 = scmp.ne.s32.totalorder %s168, %s169
    %p181 = scmp.eq.s32.totalorder %s23, 1
    %p182 = por %p180, %p181
    %p184 = scmp.ne.s32.totalorder %s169, %s183
    %p185 = scmp.eq.s32.totalorder %s23, 0
    %p186 = por %p184, %p185
    %s188 = sadd.s32 %s187, 1
    %p191 = scmp.eq.s32.totalorder %s17, 1
    %p192 = scmp.ne.s32.totalorder %s187, %s189
    %p193 = scmp.eq.s32.totalorder %s17, 0
    %p194 = por %p192, %p193
    %p195 = scmp.ne.s32.totalorder %s187, %s189
    %p196 = scmp.eq.s32.totalorder %s22, 1
    %p197 = por %p195, %p196
    %p198 = scmp.ne.s32.totalorder %s189, %s190
    %p199 = scmp.eq.s32.totalorder %s22, 0
    %p200 = por %p198, %p199
    %p201 = scmp.ne.s32.totalorder %s189, %s190
    %p202 = scmp.eq.s32.totalorder %s23, 1
    %p203 = por %p201, %p202
    %p205 = scmp.ne.s32.totalorder %s190, %s204
    %p206 = scmp.eq.s32.totalorder %s23, 0
    %p207 = por %p205, %p206
    %s209 = sadd.s32 %s208, 1
    %p212 = scmp.eq.s32.totalorder %s17, 1
    %p213 = scmp.ne.s32.totalorder %s208, %s210
    %p214 = scmp.eq.s32.totalorder %s17, 0
    %p215 = por %p213, %p214
    %p216 = scmp.ne.s32.totalorder %s208, %s210
    %p217 = scmp.eq.s32.totalorder %s22, 1
    %p218 = por %p216, %p217
    %p219 = scmp.ne.s32.totalorder %s210, %s211
    %p220 = scmp.eq.s32.totalorder %s22, 0
    %p221 = por %p219, %p220
    %p222 = scmp.ne.s32.totalorder %s210, %s211
    %p223 = scmp.eq.s32.totalorder %s23, 1
    %p224 = por %p222, %p223
    %p226 = scmp.ne.s32.totalorder %s211, %s225
    %p227 = scmp.eq.s32.totalorder %s23, 0
    %p228 = por %p226, %p227
    %s230 = sadd.s32 %s229, 1
    %p233 = scmp.eq.s32.totalorder %s17, 1
    %p234 = scmp.ne.s32.totalorder %s229, %s231
    %p235 = scmp.eq.s32.totalorder %s17, 0
    %p236 = por %p234, %p235
    %p237 = scmp.ne.s32.totalorder %s229, %s231
    %p238 = scmp.eq.s32.totalorder %s22, 1
    %p239 = por %p237, %p238
    %p240 = scmp.ne.s32.totalorder %s231, %s232
    %p241 = scmp.eq.s32.totalorder %s22, 0
    %p242 = por %p240, %p241
    %p243 = scmp.ne.s32.totalorder %s231, %s232
    %p244 = scmp.eq.s32.totalorder %s23, 1
    %p245 = por %p243, %p244
    %p247 = scmp.ne.s32.totalorder %s232, %s246
    %p248 = scmp.eq.s32.totalorder %s23, 0
    %p249 = por %p247, %p248
    %s250 = ssub.s32 %s17, %s24
    %p251 = scmp.eq.s32.totalorder %s250, 0
    %s253 = sadd.s32 %s252, 1
    %s254 = scalar_select %p251, %s252, %s253
    %p257 = pneg %p251
    %p258 = scmp.eq.s32.totalorder %s17, 1
    %p259 = por %p257, %p258
    %p260 = scmp.ne.s32.totalorder %s252, %s255
    %p261 = scmp.eq.s32.totalorder %s17, 0
    %p262 = por %p260, %p261
    %p263 = scmp.ne.s32.totalorder %s252, %s255
    %p264 = scmp.eq.s32.totalorder %s22, 1
    %p265 = por %p263, %p264
    %p266 = scmp.ne.s32.totalorder %s255, %s256
    %p267 = scmp.eq.s32.totalorder %s22, 0
    %p268 = por %p266, %p267
    %p269 = scmp.ne.s32.totalorder %s255, %s256
    %p270 = scmp.eq.s32.totalorder %s23, 1
    %p271 = por %p269, %p270
    %p273 = scmp.ne.s32.totalorder %s256, %s272
    %p274 = scmp.eq.s32.totalorder %s23, 0
    %p275 = por %p273, %p274
    %s276 = ssub.s32 %s17, %s24
    %p277 = scmp.eq.s32.totalorder %s276, 0
    %s279 = sadd.s32 %s278, 1
    %s280 = scalar_select %p277, %s278, %s279
    %p283 = pneg %p277
    %p284 = scmp.eq.s32.totalorder %s17, 1
    %p285 = por %p283, %p284
    %p286 = scmp.ne.s32.totalorder %s278, %s281
    %p287 = scmp.eq.s32.totalorder %s17, 0
    %p288 = por %p286, %p287
    %p289 = scmp.ne.s32.totalorder %s278, %s281
    %p290 = scmp.eq.s32.totalorder %s22, 1
    %p291 = por %p289, %p290
    %p292 = scmp.ne.s32.totalorder %s281, %s282
    %p293 = scmp.eq.s32.totalorder %s22, 0
    %p294 = por %p292, %p293
    %p295 = scmp.ne.s32.totalorder %s281, %s282
    %p296 = scmp.eq.s32.totalorder %s23, 1
    %p297 = por %p295, %p296
    %p299 = scmp.ne.s32.totalorder %s282, %s298
    %p300 = scmp.eq.s32.totalorder %s23, 0
    %p301 = por %p299, %p300
    %p302 = scmp.le.s32.totalorder 1, %s17
    %p303 = scmp.lt.s32.totalorder %s17, 3
    %p304 = pnand %p302, %p303
    %p305 = pneg %p304
    // Predicated region
    $region9: #{decoder_forward_batch.1} parent=5 // pred_check
      _
    $region10: #{decoder_forward_batch.1} parent=5 // pred_check_branch
      %307 = sbr.rel (%p304) target = $region12
    $region11: #{decoder_forward_batch.1} parent=5 // pred_region
      %s308 = ssub.s32 %s17, 1
      // Predicated region
      $region13: #{decoder_forward_batch.1} parent=11 // pred_check
        %p309 = pneg %p64
      $region14: #{decoder_forward_batch.1} parent=11 // pred_check_branch
        %311 = sbr.rel (%p309) target = $region16
      $region15: #{decoder_forward_batch.1} parent=11 // pred_region
        _
      $region16: #{decoder_forward_batch.1} parent=11 // pred_fallthru
        _
      // Predicated region
      $region17: #{decoder_forward_batch.1} parent=11 // pred_check
        %p312 = pneg %p85
      $region18: #{decoder_forward_batch.1} parent=11 // pred_check_branch
        %314 = sbr.rel (%p312) target = $region20
      $region19: #{decoder_forward_batch.1} parent=11 // pred_region
        _
      $region20: #{decoder_forward_batch.1} parent=11 // pred_fallthru
        _
      // Predicated region
      $region21: #{decoder_forward_batch.1} parent=11 // pred_check
        %p315 = pneg %p106
      $region22: #{decoder_forward_batch.1} parent=11 // pred_check_branch
        %317 = sbr.rel (%p315) target = $region24
      $region23: #{decoder_forward_batch.1} parent=11 // pred_region
        _
      $region24: #{decoder_forward_batch.1} parent=11 // pred_fallthru
        _
      // Predicated region
      $region25: #{decoder_forward_batch.1} parent=11 // pred_check
        %p318 = pneg %p179
      $region26: #{decoder_forward_batch.1} parent=11 // pred_check_branch
        %320 = sbr.rel (%p318) target = $region28
      $region27: #{decoder_forward_batch.1} parent=11 // pred_region
        _
      $region28: #{decoder_forward_batch.1} parent=11 // pred_fallthru
        _
      // Predicated region
      $region29: #{decoder_forward_batch.1} parent=11 // pred_check
        %p321 = pneg %p200
      $region30: #{decoder_forward_batch.1} parent=11 // pred_check_branch
        %323 = sbr.rel (%p321) target = $region32
      $region31: #{decoder_forward_batch.1} parent=11 // pred_region
        _
      $region32: #{decoder_forward_batch.1} parent=11 // pred_fallthru
        _
      // Predicated region
      $region33: #{decoder_forward_batch.1} parent=11 // pred_check
        %p324 = pneg %p221
      $region34: #{decoder_forward_batch.1} parent=11 // pred_check_branch
        %326 = sbr.rel (%p324) target = $region36
      $region35: #{decoder_forward_batch.1} parent=11 // pred_region
        _
      $region36: #{decoder_forward_batch.1} parent=11 // pred_fallthru
        _
      // Predicated region
      $region37: #{decoder_forward_batch.1} parent=11 // pred_check
        %p327 = pneg %p242
      $region38: #{decoder_forward_batch.1} parent=11 // pred_check_branch
        %329 = sbr.rel (%p327) target = $region40
      $region39: #{decoder_forward_batch.1} parent=11 // pred_region
        _
      $region40: #{decoder_forward_batch.1} parent=11 // pred_fallthru
        _
    $region12: #{decoder_forward_batch.1} parent=5 // pred_fallthru
      _
    %p330 = scmp.lt.s32.totalorder %s17, 2
    // Predicated region
    $region41: #{decoder_forward_batch.1} parent=5 // pred_check
      %p331 = pneg %p330
    $region42: #{decoder_forward_batch.1} parent=5 // pred_check_branch
      %333 = sbr.rel (%p331) target = $region44
    $region43: #{decoder_forward_batch.1} parent=5 // pred_region
      // Predicated region
      $region45: #{decoder_forward_batch.1} parent=43 // pred_check
        %p334 = pneg %p37
      $region46: #{decoder_forward_batch.1} parent=43 // pred_check_branch
        %336 = sbr.rel (%p334) target = $region48
      $region47: #{decoder_forward_batch.1} parent=43 // pred_region
        %p337 = scmp.lt.s32.totalorder %s17, 1
        %s338 = scalar_select %p337, %s17, 1
        %s339 = smul.addr %s338, 8
        %s340 = scalar_lea.vmem %s0, %s339
      $region48: #{decoder_forward_batch.1} parent=43 // pred_fallthru
        _
      // Predicated region
      $region49: #{decoder_forward_batch.1} parent=43 // pred_check
        %p341 = pneg %p126
      $region50: #{decoder_forward_batch.1} parent=43 // pred_check_branch
        %343 = sbr.rel (%p341) target = $region52
      $region51: #{decoder_forward_batch.1} parent=43 // pred_region
        %p344 = scmp.lt.s32.totalorder %s17, 1
        %s345 = scalar_select %p344, %s17, 1
        %s346 = smul.addr %s345, 8
        %s347 = scalar_lea.vmem %s4, %s346
      $region52: #{decoder_forward_batch.1} parent=43 // pred_fallthru
        _
      // Predicated region
      $region53: #{decoder_forward_batch.1} parent=43 // pred_check
        %p348 = pneg %p152
      $region54: #{decoder_forward_batch.1} parent=43 // pred_check_branch
        %350 = sbr.rel (%p348) target = $region56
      $region55: #{decoder_forward_batch.1} parent=43 // pred_region
        %p351 = scmp.lt.s32.totalorder %s17, 1
        %s352 = scalar_select %p351, %s17, 1
        %s353 = smul.addr %s352, 8
        %s354 = scalar_lea.vmem %s5, %s353
      $region56: #{decoder_forward_batch.1} parent=43 // pred_fallthru
        _
      // Predicated region
      $region57: #{decoder_forward_batch.1} parent=43 // pred_check
        %p355 = pneg %p262
      $region58: #{decoder_forward_batch.1} parent=43 // pred_check_branch
        %357 = sbr.rel (%p355) target = $region60
      $region59: #{decoder_forward_batch.1} parent=43 // pred_region
        %p358 = scmp.lt.s32.totalorder %s17, 1
        %s359 = scalar_select %p358, %s17, 1
        %s360 = smul.addr %s359, 8
        %s361 = scalar_lea.vmem %s10, %s360
      $region60: #{decoder_forward_batch.1} parent=43 // pred_fallthru
        _
    $region44: #{decoder_forward_batch.1} parent=5 // pred_fallthru
      _
    %p362 = scmp.le.s32.totalorder 1, %s17
    %p363 = scmp.lt.s32.totalorder %s17, 3
    %p364 = pnand %p362, %p363
    %p365 = pneg %p364
    // Predicated region
    $region61: #{decoder_forward_batch.1} parent=5 // pred_check
      _
    $region62: #{decoder_forward_batch.1} parent=5 // pred_check_branch
      %367 = sbr.rel (%p364) target = $region64
    $region63: #{decoder_forward_batch.1} parent=5 // pred_region
      %s368 = ssub.s32 %s17, 1
      %p369 = scmp.lt.s32.totalorder %s22, 1
      %s370 = scalar_select %p369, %s22, 1
      %s371 = smul.addr %s370, 8
      %s372 = scalar_lea.vmem %s0, %s371
      %p373 = pneg %p43
      %p374 = pneg %p40
      %p375 = pneg %p64
      %p376 = pneg %p61
      %p377 = pneg %p85
      %p378 = pneg %p82
      %p379 = pneg %p106
      %p380 = pneg %p103
      %p381 = scmp.lt.s32.totalorder %s22, 1
      %s382 = scalar_select %p381, %s22, 1
      %s383 = smul.addr %s382, 8
      %s384 = scalar_lea.vmem %s4, %s383
      %p385 = pneg %p132
      %p386 = pneg %p129
      %p387 = scmp.lt.s32.totalorder %s22, 1
      %s388 = scalar_select %p387, %s22, 1
      %s389 = smul.addr %s388, 8
      %s390 = scalar_lea.vmem %s5, %s389
      %p391 = pneg %p158
      %p392 = pneg %p155
      %p393 = pneg %p179
      %p394 = pneg %p176
      %p395 = pneg %p200
      %p396 = pneg %p197
      %p397 = pneg %p221
      %p398 = pneg %p218
      %p399 = pneg %p242
      %p400 = pneg %p239
      %p401 = scmp.lt.s32.totalorder %s22, 1
      %s402 = scalar_select %p401, %s22, 1
      %s403 = smul.addr %s402, 8
      %s404 = scalar_lea.vmem %s10, %s403
      %p405 = pneg %p268
      %p406 = pneg %p265
      %p407 = pneg %p294
      %p408 = pneg %p291
      %p409 = scmp.lt.s32.totalorder %s22, 1
      %s410 = scalar_select %p409, %s22, 1
      %s411 = scalar_lea.vmem %s11, %s410
      %p412 = scmp.lt.s32.totalorder %s22, 1
      %s413 = scalar_select %p412, %s22, 1
      %s414 = smul.addr %s413, 8
      %s415 = scalar_lea.vmem %s0, %s414
      %p416 = scmp.lt.s32.totalorder %s22, 1
      %s417 = scalar_select %p416, %s22, 1
      %s418 = smul.addr %s417, 8
      %s419 = scalar_lea.vmem %s4, %s418
      %p420 = scmp.lt.s32.totalorder %s22, 1
      %s421 = scalar_select %p420, %s22, 1
      %s422 = smul.addr %s421, 8
      %s423 = scalar_lea.vmem %s5, %s422
      %p424 = scmp.lt.s32.totalorder %s22, 1
      %s425 = scalar_select %p424, %s22, 1
      %s426 = smul.addr %s425, 8
      %s427 = scalar_lea.vmem %s10, %s426
      %p428 = scmp.lt.s32.totalorder %s22, 1
      %s429 = scalar_select %p428, %s22, 1
      %s430 = scalar_lea.vmem %s11, %s429
      %v431 = vld [vmem:[%s2] sm:$0xff]
      %v432 = vld [vmem:[%s2 + $0x8] sm:$0xff]
      %v433 = vld [vmem:[%s2 + $0x10] sm:$0xff]
      %v434 = vld [vmem:[%s2 + $0x18] sm:$0xff]
      %v435 = vld [vmem:[%s415] sm:$0xff]
      %v436 = vld [vmem:[%s1] sm:$0xff]
      %v437 = vld [vmem:[%s1 + $0x8] sm:$0xff]
      %v438 = vld [vmem:[%s1 + $0x10] sm:$0xff]
      %v439 = vld [vmem:[%s1 + $0x18] sm:$0xff]
      %v440 = vld [vmem:[%s3] sm:$0x1]
      %v442 = vlaneseq
      %v443 = vshrl.u32 %v442, 7
      %v444 = vsub.s32 0, %v443
      %v445 = vrot.slane %v440, %v444
      %vm447 = vcmask 261120
      %v449 = vsel %vm447, %v435, 0
      %451 = vmatprep.subr.mxu0 0.0
      %452 = vmatpush1.msra.mxu0 %v436
      %453 = vmatprep.subr.mxu0 0.0
      %454 = vmatpush1.msra.mxu0 %v437
      %455 = vmatprep.subr.mxu0 0.0
      %456 = vmatpush1.msra.mxu0 %v438
      %457 = vmatprep.subr.mxu0 0.0
      %458 = vmatpush1.msra.mxu0 %v439
      %459 = vmatprep.subr.mxu0 0.0
      %460 = vmatpush1.msra.mxu0 0.0
      %461 = vmatprep.subr.mxu0 0.0
      %462 = vmatpush1.msra.mxu0 0.0
      %463 = vmatprep.subr.mxu0 0.0
      %464 = vmatpush1.msra.mxu0 0.0
      %465 = vmatprep.subr.mxu0 0.0
      %466 = vmatpush1.msra.mxu0 0.0
      %467 = vmatprep.subr.mxu0 0.0
      %468 = vmatpush1.msra.mxu0 0.0
      %469 = vmatprep.subr.mxu0 0.0
      %470 = vmatpush1.msra.mxu0 0.0
      %471 = vmatprep.subr.mxu0 0.0
      %472 = vmatpush1.msra.mxu0 0.0
      %473 = vmatprep.subr.mxu0 0.0
      %474 = vmatpush1.msra.mxu0 0.0
      %475 = vmatprep.subr.mxu0 0.0
      %476 = vmatpush1.msra.mxu0 0.0
      %477 = vmatprep.subr.mxu0 0.0
      %478 = vmatpush1.msra.mxu0 0.0
      %479 = vmatprep.subr.mxu0 0.0
      %480 = vmatpush1.msra.mxu0 0.0
      %481 = vmatprep.subr.mxu0 0.0
      %482 = vmatpush1.msra.mxu0 0.0
      %483 = vmatprep.subr.mxu0 0.0
      %484 = vmatpush1.msra.mxu0 0.0
      %485 = vmatprep.subr.mxu0 0.0
      %486 = vmatpush1.msra.mxu0 0.0
      %487 = vmatprep.subr.mxu0 0.0
      %488 = vmatpush1.msra.mxu0 0.0
      %489 = vmatprep.subr.mxu0 0.0
      %490 = vmatpush1.msra.mxu0 0.0
      %491 = vmatprep.subr.mxu0 0.0
      %492 = vmatpush1.msra.mxu0 0.0
      %493 = vmatprep.subr.mxu0 0.0
      %494 = vmatpush1.msra.mxu0 0.0
      %495 = vmatprep.subr.mxu0 0.0
      %496 = vmatpush1.msra.mxu0 0.0
      %497 = vmatprep.subr.mxu0 0.0
      %498 = vmatpush1.msra.mxu0 0.0
      %499 = vmatprep.subr.mxu0 0.0
      %500 = vmatpush1.msra.mxu0 0.0
      %501 = vmatprep.subr.mxu0 0.0
      %502 = vmatpush1.msra.mxu0 0.0
      %503 = vmatprep.subr.mxu0 0.0
      %504 = vmatpush1.msra.mxu0 0.0
      %505 = vmatprep.subr.mxu0 0.0
      %506 = vmatpush1.msra.mxu0 0.0
      %507 = vmatprep.subr.mxu0 0.0
      %508 = vmatpush1.msra.mxu0 0.0
      %509 = vmatprep.subr.mxu0 0.0
      %510 = vmatpush1.msra.mxu0 0.0
      %511 = vmatprep.subr.mxu0 0.0
      %512 = vmatpush1.msra.mxu0 0.0
      %513 = vmatprep.subr.mxu0 0.0
      %514 = vmatpush1.msra.mxu0 0.0
      %515 = vmatprep.mubr.f32.mxu0 0.0
      %516 = vmatmul.mubr.f32.gmra.mrb[0].mxu0 %v449
      %v517 = vpop.f32.mrb[0].mxu0
      %v518 = vadd.f32 %v445, %v517
      %v519 = vpop.f32.mrb[0].mxu0
      %520 = vdwg.mxu0
      %521 = vst [vmem:[#allocation2] sm:$0xff] %v518
      %v522 = vld [vmem:[#allocation2] sm:$0x1]
      %v524 = vsel %vm447, 0.0, 0
      %526 = vmatprep.subr.mxu0 0.0
      %527 = vmatpush1.msra.mxu0 %v431
      %528 = vmatprep.subr.mxu0 0.0
      %529 = vmatpush1.msra.mxu0 %v432
      %530 = vmatprep.subr.mxu0 0.0
      %531 = vmatpush1.msra.mxu0 %v433
      %532 = vmatprep.subr.mxu0 0.0
      %533 = vmatpush1.msra.mxu0 %v434
      %534 = vmatprep.subr.mxu0 0.0
      %535 = vmatpush1.msra.mxu0 0.0
      %536 = vmatprep.subr.mxu0 0.0
      %537 = vmatpush1.msra.mxu0 0.0
      %538 = vmatprep.subr.mxu0 0.0
      %539 = vmatpush1.msra.mxu0 0.0
      %540 = vmatprep.subr.mxu0 0.0
      %541 = vmatpush1.msra.mxu0 0.0
      %542 = vmatprep.subr.mxu0 0.0
      %543 = vmatpush1.msra.mxu0 0.0
      %544 = vmatprep.subr.mxu0 0.0
      %545 = vmatpush1.msra.mxu0 0.0
      %546 = vmatprep.subr.mxu0 0.0
      %547 = vmatpush1.msra.mxu0 0.0
      %548 = vmatprep.subr.mxu0 0.0
      %549 = vmatpush1.msra.mxu0 0.0
      %550 = vmatprep.subr.mxu0 0.0
      %551 = vmatpush1.msra.mxu0 0.0
      %552 = vmatprep.subr.mxu0 0.0
      %553 = vmatpush1.msra.mxu0 0.0
      %554 = vmatprep.subr.mxu0 0.0
      %555 = vmatpush1.msra.mxu0 0.0
      %556 = vmatprep.subr.mxu0 0.0
      %557 = vmatpush1.msra.mxu0 0.0
      %558 = vmatprep.subr.mxu0 0.0
      %559 = vmatpush1.msra.mxu0 0.0
      %560 = vmatprep.subr.mxu0 0.0
      %561 = vmatpush1.msra.mxu0 0.0
      %562 = vmatprep.subr.mxu0 0.0
      %563 = vmatpush1.msra.mxu0 0.0
      %564 = vmatprep.subr.mxu0 0.0
      %565 = vmatpush1.msra.mxu0 0.0
      %566 = vmatprep.subr.mxu0 0.0
      %567 = vmatpush1.msra.mxu0 0.0
      %568 = vmatprep.subr.mxu0 0.0
      %569 = vmatpush1.msra.mxu0 0.0
      %570 = vmatprep.subr.mxu0 0.0
      %571 = vmatpush1.msra.mxu0 0.0
      %572 = vmatprep.subr.mxu0 0.0
      %573 = vmatpush1.msra.mxu0 0.0
      %574 = vmatprep.subr.mxu0 0.0
      %575 = vmatpush1.msra.mxu0 0.0
      %576 = vmatprep.subr.mxu0 0.0
      %577 = vmatpush1.msra.mxu0 0.0
      %578 = vmatprep.subr.mxu0 0.0
      %579 = vmatpush1.msra.mxu0 0.0
      %580 = vmatprep.subr.mxu0 0.0
      %581 = vmatpush1.msra.mxu0 0.0
      %582 = vmatprep.subr.mxu0 0.0
      %583 = vmatpush1.msra.mxu0 0.0
      %584 = vmatprep.subr.mxu0 0.0
      %585 = vmatpush1.msra.mxu0 0.0
      %586 = vmatprep.subr.mxu0 0.0
      %587 = vmatpush1.msra.mxu0 0.0
      %588 = vmatprep.subr.mxu0 0.0
      %589 = vmatpush1.msra.mxu0 0.0
      %590 = vmatprep.mubr.f32.mxu0 0.0
      %591 = vmatmul.mubr.f32.gmra.mrb[0].mxu0 %v524
      %v592 = vpop.f32.mrb[0].mxu0
      %v593 = vadd.f32 0.0, %v592
      %v594 = vpop.f32.mrb[0].mxu0
      %595 = vdwg.mxu0
      %v596 = vadd.f32 %v522, %v593
      %v597 = vtanh.pop %v596
      %v598 = vmul.f32 %v597, 0.5
      %v599 = vadd.f32 %v598, 0.5
      %v600 = vmul.f32 %v599, 0.0
      %602 = vrot.lane.b32.xlu0 %v597, 64
      %v603 = vpop.permute.xlu0 %602
      %v605 = vmul.f32 %v599, %v603
      %607 = vrot.lane.b32.xlu0 %v605, 32
      %v608 = vpop.permute.xlu0 %607
      %v610 = vadd.f32 %v600, %v608
      %v611 = vtanh.pop %v610
      %613 = vrot.lane.b32.xlu0 %v611, 64
      %v614 = vpop.permute.xlu0 %613
      %v616 = vmul.f32 %v599, %v614
      %618 = vrot.lane.b32.xlu0 %v616, 32
      %v619 = vpop.permute.xlu0 %618
      %vm621 = vcmask 253952
      %622 = vst.msk [vmem:[#allocation3] sm:$0x1] %vm621, %v619
      %v623 = vld [vmem:[#allocation2 + $0x1] sm:$0x1]
      %v624 = vsel %vm447, %v619, 0
      %626 = vmatprep.subr.mxu0 0.0
      %627 = vmatpush1.msra.mxu0 %v431
      %628 = vmatprep.subr.mxu0 0.0
      %629 = vmatpush1.msra.mxu0 %v432
      %630 = vmatprep.subr.mxu0 0.0
      %631 = vmatpush1.msra.mxu0 %v433
      %632 = vmatprep.subr.mxu0 0.0
      %633 = vmatpush1.msra.mxu0 %v434
      %634 = vmatprep.subr.mxu0 0.0
      %635 = vmatpush1.msra.mxu0 0.0
      %636 = vmatprep.subr.mxu0 0.0
      %637 = vmatpush1.msra.mxu0 0.0
      %638 = vmatprep.subr.mxu0 0.0
      %639 = vmatpush1.msra.mxu0 0.0
      %640 = vmatprep.subr.mxu0 0.0
      %641 = vmatpush1.msra.mxu0 0.0
      %642 = vmatprep.subr.mxu0 0.0
      %643 = vmatpush1.msra.mxu0 0.0
      %644 = vmatprep.subr.mxu0 0.0
      %645 = vmatpush1.msra.mxu0 0.0
      %646 = vmatprep.subr.mxu0 0.0
      %647 = vmatpush1.msra.mxu0 0.0
      %648 = vmatprep.subr.mxu0 0.0
      %649 = vmatpush1.msra.mxu0 0.0
      %650 = vmatprep.subr.mxu0 0.0
      %651 = vmatpush1.msra.mxu0 0.0
      %652 = vmatprep.subr.mxu0 0.0
      %653 = vmatpush1.msra.mxu0 0.0
      %654 = vmatprep.subr.mxu0 0.0
      %655 = vmatpush1.msra.mxu0 0.0
      %656 = vmatprep.subr.mxu0 0.0
      %657 = vmatpush1.msra.mxu0 0.0
      %658 = vmatprep.subr.mxu0 0.0
      %659 = vmatpush1.msra.mxu0 0.0
      %660 = vmatprep.subr.mxu0 0.0
      %661 = vmatpush1.msra.mxu0 0.0
      %662 = vmatprep.subr.mxu0 0.0
      %663 = vmatpush1.msra.mxu0 0.0
      %664 = vmatprep.subr.mxu0 0.0
      %665 = vmatpush1.msra.mxu0 0.0
      %666 = vmatprep.subr.mxu0 0.0
      %667 = vmatpush1.msra.mxu0 0.0
      %668 = vmatprep.subr.mxu0 0.0
      %669 = vmatpush1.msra.mxu0 0.0
      %670 = vmatprep.subr.mxu0 0.0
      %671 = vmatpush1.msra.mxu0 0.0
      %672 = vmatprep.subr.mxu0 0.0
      %673 = vmatpush1.msra.mxu0 0.0
      %674 = vmatprep.subr.mxu0 0.0
      %675 = vmatpush1.msra.mxu0 0.0
      %676 = vmatprep.subr.mxu0 0.0
      %677 = vmatpush1.msra.mxu0 0.0
      %678 = vmatprep.subr.mxu0 0.0
      %679 = vmatpush1.msra.mxu0 0.0
      %680 = vmatprep.subr.mxu0 0.0
      %681 = vmatpush1.msra.mxu0 0.0
      %682 = vmatprep.subr.mxu0 0.0
      %683 = vmatpush1.msra.mxu0 0.0
      %684 = vmatprep.subr.mxu0 0.0
      %685 = vmatpush1.msra.mxu0 0.0
      %686 = vmatprep.subr.mxu0 0.0
      %687 = vmatpush1.msra.mxu0 0.0
      %688 = vmatprep.subr.mxu0 0.0
      %689 = vmatpush1.msra.mxu0 0.0
      %690 = vmatprep.mubr.f32.mxu0 0.0
      %691 = vmatmul.mubr.f32.gmra.mrb[0].mxu0 %v624
      %v692 = vpop.f32.mrb[0].mxu0
      %v693 = vadd.f32 0.0, %v692
      %v694 = vpop.f32.mrb[0].mxu0
      %695 = vdwg.mxu0
      %v696 = vadd.f32 %v623, %v693
      %v697 = vtanh.pop %v696
      %v698 = vmul.f32 %v697, 0.5
      %v699 = vadd.f32 %v698, 0.5
      %v700 = vmul.f32 %v699, %v610
      %702 = vrot.lane.b32.xlu0 %v697, 64
      %v703 = vpop.permute.xlu0 %702
      %v705 = vmul.f32 %v699, %v703
      %707 = vrot.lane.b32.xlu0 %v705, 32
      %v708 = vpop.permute.xlu0 %707
      %v710 = vadd.f32 %v700, %v708
      %v711 = vtanh.pop %v710
      %713 = vrot.lane.b32.xlu0 %v711, 64
      %v714 = vpop.permute.xlu0 %713
      %v716 = vmul.f32 %v699, %v714
      %718 = vrot.lane.b32.xlu0 %v716, 32
      %v719 = vpop.permute.xlu0 %718
      %721 = vst.msk [vmem:[#allocation3 + $0x1] sm:$0x1] %vm621, %v719
      %v722 = vld [vmem:[#allocation2 + $0x2] sm:$0x1]
      %v723 = vsel %vm447, %v719, 0
      %725 = vmatprep.subr.mxu0 0.0
      %726 = vmatpush1.msra.mxu0 %v431
      %727 = vmatprep.subr.mxu0 0.0
      %728 = vmatpush1.msra.mxu0 %v432
      %729 = vmatprep.subr.mxu0 0.0
      %730 = vmatpush1.msra.mxu0 %v433
      %731 = vmatprep.subr.mxu0 0.0
      %732 = vmatpush1.msra.mxu0 %v434
      %733 = vmatprep.subr.mxu0 0.0
      %734 = vmatpush1.msra.mxu0 0.0
      %735 = vmatprep.subr.mxu0 0.0
      %736 = vmatpush1.msra.mxu0 0.0
      %737 = vmatprep.subr.mxu0 0.0
      %738 = vmatpush1.msra.mxu0 0.0
      %739 = vmatprep.subr.mxu0 0.0
      %740 = vmatpush1.msra.mxu0 0.0
      %741 = vmatprep.subr.mxu0 0.0
      %742 = vmatpush1.msra.mxu0 0.0
      %743 = vmatprep.subr.mxu0 0.0
      %744 = vmatpush1.msra.mxu0 0.0
      %745 = vmatprep.subr.mxu0 0.0
      %746 = vmatpush1.msra.mxu0 0.0
      %747 = vmatprep.subr.mxu0 0.0
      %748 = vmatpush1.msra.mxu0 0.0
      %749 = vmatprep.subr.mxu0 0.0
      %750 = vmatpush1.msra.mxu0 0.0
      %751 = vmatprep.subr.mxu0 0.0
      %752 = vmatpush1.msra.mxu0 0.0
      %753 = vmatprep.subr.mxu0 0.0
      %754 = vmatpush1.msra.mxu0 0.0
      %755 = vmatprep.subr.mxu0 0.0
      %756 = vmatpush1.msra.mxu0 0.0
      %757 = vmatprep.subr.mxu0 0.0
      %758 = vmatpush1.msra.mxu0 0.0
      %759 = vmatprep.subr.mxu0 0.0
      %760 = vmatpush1.msra.mxu0 0.0
      %761 = vmatprep.subr.mxu0 0.0
      %762 = vmatpush1.msra.mxu0 0.0
      %763 = vmatprep.subr.mxu0 0.0
      %764 = vmatpush1.msra.mxu0 0.0
      %765 = vmatprep.subr.mxu0 0.0
      %766 = vmatpush1.msra.mxu0 0.0
      %767 = vmatprep.subr.mxu0 0.0
      %768 = vmatpush1.msra.mxu0 0.0
      %769 = vmatprep.subr.mxu0 0.0
      %770 = vmatpush1.msra.mxu0 0.0
      %771 = vmatprep.subr.mxu0 0.0
      %772 = vmatpush1.msra.mxu0 0.0
      %773 = vmatprep.subr.mxu0 0.0
      %774 = vmatpush1.msra.mxu0 0.0
      %775 = vmatprep.subr.mxu0 0.0
      %776 = vmatpush1.msra.mxu0 0.0
      %777 = vmatprep.subr.mxu0 0.0
      %778 = vmatpush1.msra.mxu0 0.0
      %779 = vmatprep.subr.mxu0 0.0
      %780 = vmatpush1.msra.mxu0 0.0
      %781 = vmatprep.subr.mxu0 0.0
      %782 = vmatpush1.msra.mxu0 0.0
      %783 = vmatprep.subr.mxu0 0.0
      %784 = vmatpush1.msra.mxu0 0.0
      %785 = vmatprep.subr.mxu0 0.0
      %786 = vmatpush1.msra.mxu0 0.0
      %787 = vmatprep.subr.mxu0 0.0
      %788 = vmatpush1.msra.mxu0 0.0
      %789 = vmatprep.mubr.f32.mxu0 0.0
      %790 = vmatmul.mubr.f32.gmra.mrb[0].mxu0 %v723
      %v791 = vpop.f32.mrb[0].mxu0
      %v792 = vadd.f32 0.0, %v791
      %v793 = vpop.f32.mrb[0].mxu0
      %794 = vdwg.mxu0
      %v795 = vadd.f32 %v722, %v792
      %v796 = vtanh.pop %v795
      %v797 = vmul.f32 %v796, 0.5
      %v798 = vadd.f32 %v797, 0.5
      %v799 = vmul.f32 %v798, %v710
      %801 = vrot.lane.b32.xlu0 %v796, 64
      %v802 = vpop.permute.xlu0 %801
      %v804 = vmul.f32 %v798, %v802
      %806 = vrot.lane.b32.xlu0 %v804, 32
      %v807 = vpop.permute.xlu0 %806
      %v809 = vadd.f32 %v799, %v807
      %v810 = vtanh.pop %v809
      %812 = vrot.lane.b32.xlu0 %v810, 64
      %v813 = vpop.permute.xlu0 %812
      %v815 = vmul.f32 %v798, %v813
      %817 = vrot.lane.b32.xlu0 %v815, 32
      %v818 = vpop.permute.xlu0 %817
      %820 = vst.msk [vmem:[#allocation3 + $0x2] sm:$0x1] %vm621, %v818
      %v821 = vld [vmem:[#allocation2 + $0x3] sm:$0x1]
      %v822 = vsel %vm447, %v818, 0
      %824 = vmatprep.subr.mxu0 0.0
      %825 = vmatpush1.msra.mxu0 %v431
      %826 = vmatprep.subr.mxu0 0.0
      %827 = vmatpush1.msra.mxu0 %v432
      %828 = vmatprep.subr.mxu0 0.0
      %829 = vmatpush1.msra.mxu0 %v433
      %830 = vmatprep.subr.mxu0 0.0
      %831 = vmatpush1.msra.mxu0 %v434
      %832 = vmatprep.subr.mxu0 0.0
      %833 = vmatpush1.msra.mxu0 0.0
      %834 = vmatprep.subr.mxu0 0.0
      %835 = vmatpush1.msra.mxu0 0.0
      %836 = vmatprep.subr.mxu0 0.0
      %837 = vmatpush1.msra.mxu0 0.0
      %838 = vmatprep.subr.mxu0 0.0
      %839 = vmatpush1.msra.mxu0 0.0
      %840 = vmatprep.subr.mxu0 0.0
      %841 = vmatpush1.msra.mxu0 0.0
      %842 = vmatprep.subr.mxu0 0.0
      %843 = vmatpush1.msra.mxu0 0.0
      %844 = vmatprep.subr.mxu0 0.0
      %845 = vmatpush1.msra.mxu0 0.0
      %846 = vmatprep.subr.mxu0 0.0
      %847 = vmatpush1.msra.mxu0 0.0
      %848 = vmatprep.subr.mxu0 0.0
      %849 = vmatpush1.msra.mxu0 0.0
      %850 = vmatprep.subr.mxu0 0.0
      %851 = vmatpush1.msra.mxu0 0.0
      %852 = vmatprep.subr.mxu0 0.0
      %853 = vmatpush1.msra.mxu0 0.0
      %854 = vmatprep.subr.mxu0 0.0
      %855 = vmatpush1.msra.mxu0 0.0
      %856 = vmatprep.subr.mxu0 0.0
      %857 = vmatpush1.msra.mxu0 0.0
      %858 = vmatprep.subr.mxu0 0.0
      %859 = vmatpush1.msra.mxu0 0.0
      %860 = vmatprep.subr.mxu0 0.0
      %861 = vmatpush1.msra.mxu0 0.0
      %862 = vmatprep.subr.mxu0 0.0
      %863 = vmatpush1.msra.mxu0 0.0
      %864 = vmatprep.subr.mxu0 0.0
      %865 = vmatpush1.msra.mxu0 0.0
      %866 = vmatprep.subr.mxu0 0.0
      %867 = vmatpush1.msra.mxu0 0.0
      %868 = vmatprep.subr.mxu0 0.0
      %869 = vmatpush1.msra.mxu0 0.0
      %870 = vmatprep.subr.mxu0 0.0
      %871 = vmatpush1.msra.mxu0 0.0
      %872 = vmatprep.subr.mxu0 0.0
      %873 = vmatpush1.msra.mxu0 0.0
      %874 = vmatprep.subr.mxu0 0.0
      %875 = vmatpush1.msra.mxu0 0.0
      %876 = vmatprep.subr.mxu0 0.0
      %877 = vmatpush1.msra.mxu0 0.0
      %878 = vmatprep.subr.mxu0 0.0
      %879 = vmatpush1.msra.mxu0 0.0
      %880 = vmatprep.subr.mxu0 0.0
      %881 = vmatpush1.msra.mxu0 0.0
      %882 = vmatprep.subr.mxu0 0.0
      %883 = vmatpush1.msra.mxu0 0.0
      %884 = vmatprep.subr.mxu0 0.0
      %885 = vmatpush1.msra.mxu0 0.0
      %886 = vmatprep.subr.mxu0 0.0
      %887 = vmatpush1.msra.mxu0 0.0
      %888 = vmatprep.mubr.f32.mxu0 0.0
      %889 = vmatmul.mubr.f32.gmra.mrb[0].mxu0 %v822
      %v890 = vpop.f32.mrb[0].mxu0
      %v891 = vadd.f32 0.0, %v890
      %v892 = vpop.f32.mrb[0].mxu0
      %893 = vdwg.mxu0
      %v894 = vadd.f32 %v821, %v891
      %v895 = vtanh.pop %v894
      %v896 = vmul.f32 %v895, 0.5
      %v897 = vadd.f32 %v896, 0.5
      %v898 = vmul.f32 %v897, %v809
      %900 = vrot.lane.b32.xlu0 %v895, 64
      %v901 = vpop.permute.xlu0 %900
      %v903 = vmul.f32 %v897, %v901
      %905 = vrot.lane.b32.xlu0 %v903, 32
      %v906 = vpop.permute.xlu0 %905
      %v908 = vadd.f32 %v898, %v906
      %v909 = vtanh.pop %v908
      %911 = vrot.lane.b32.xlu0 %v909, 64
      %v912 = vpop.permute.xlu0 %911
      %v914 = vmul.f32 %v897, %v912
      %916 = vrot.lane.b32.xlu0 %v914, 32
      %v917 = vpop.permute.xlu0 %916
      %919 = vst.msk [vmem:[#allocation3 + $0x3] sm:$0x1] %vm621, %v917
      %v920 = vld [vmem:[#allocation2 + $0x4] sm:$0x1]
      %v921 = vsel %vm447, %v917, 0
      %923 = vmatprep.subr.mxu0 0.0
      %924 = vmatpush1.msra.mxu0 %v431
      %925 = vmatprep.subr.mxu0 0.0
      %926 = vmatpush1.msra.mxu0 %v432
      %927 = vmatprep.subr.mxu0 0.0
      %928 = vmatpush1.msra.mxu0 %v433
      %929 = vmatprep.subr.mxu0 0.0
      %930 = vmatpush1.msra.mxu0 %v434
      %931 = vmatprep.subr.mxu0 0.0
      %932 = vmatpush1.msra.mxu0 0.0
      %933 = vmatprep.subr.mxu0 0.0
      %934 = vmatpush1.msra.mxu0 0.0
      %935 = vmatprep.subr.mxu0 0.0
      %936 = vmatpush1.msra.mxu0 0.0
      %937 = vmatprep.subr.mxu0 0.0
      %938 = vmatpush1.msra.mxu0 0.0
      %939 = vmatprep.subr.mxu0 0.0
      %940 = vmatpush1.msra.mxu0 0.0
      %941 = vmatprep.subr.mxu0 0.0
      %942 = vmatpush1.msra.mxu0 0.0
      %943 = vmatprep.subr.mxu0 0.0
      %944 = vmatpush1.msra.mxu0 0.0
      %945 = vmatprep.subr.mxu0 0.0
      %946 = vmatpush1.msra.mxu0 0.0
      %947 = vmatprep.subr.mxu0 0.0
      %948 = vmatpush1.msra.mxu0 0.0
      %949 = vmatprep.subr.mxu0 0.0
      %950 = vmatpush1.msra.mxu0 0.0
      %951 = vmatprep.subr.mxu0 0.0
      %952 = vmatpush1.msra.mxu0 0.0
      %953 = vmatprep.subr.mxu0 0.0
      %954 = vmatpush1.msra.mxu0 0.0
      %955 = vmatprep.subr.mxu0 0.0
      %956 = vmatpush1.msra.mxu0 0.0
      %957 = vmatprep.subr.mxu0 0.0
      %958 = vmatpush1.msra.mxu0 0.0
      %959 = vmatprep.subr.mxu0 0.0
      %960 = vmatpush1.msra.mxu0 0.0
      %961 = vmatprep.subr.mxu0 0.0
      %962 = vmatpush1.msra.mxu0 0.0
      %963 = vmatprep.subr.mxu0 0.0
      %964 = vmatpush1.msra.mxu0 0.0
      %965 = vmatprep.subr.mxu0 0.0
      %966 = vmatpush1.msra.mxu0 0.0
      %967 = vmatprep.subr.mxu0 0.0
      %968 = vmatpush1.msra.mxu0 0.0
      %969 = vmatprep.subr.mxu0 0.0
      %970 = vmatpush1.msra.mxu0 0.0
      %971 = vmatprep.subr.mxu0 0.0
      %972 = vmatpush1.msra.mxu0 0.0
      %973 = vmatprep.subr.mxu0 0.0
      %974 = vmatpush1.msra.mxu0 0.0
      %975 = vmatprep.subr.mxu0 0.0
      %976 = vmatpush1.msra.mxu0 0.0
      %977 = vmatprep.subr.mxu0 0.0
      %978 = vmatpush1.msra.mxu0 0.0
      %979 = vmatprep.subr.mxu0 0.0
      %980 = vmatpush1.msra.mxu0 0.0
      %981 = vmatprep.subr.mxu0 0.0
      %982 = vmatpush1.msra.mxu0 0.0
      %983 = vmatprep.subr.mxu0 0.0
      %984 = vmatpush1.msra.mxu0 0.0
      %985 = vmatprep.subr.mxu0 0.0
      %986 = vmatpush1.msra.mxu0 0.0
      %987 = vmatprep.mubr.f32.mxu0 0.0
      %988 = vmatmul.mubr.f32.gmra.mrb[0].mxu0 %v921
      %v989 = vpop.f32.mrb[0].mxu0
      %v990 = vadd.f32 0.0, %v989
      %v991 = vpop.f32.mrb[0].mxu0
      %992 = vdwg.mxu0
      %v993 = vadd.f32 %v920, %v990
      %v994 = vtanh.pop %v993
      %v995 = vmul.f32 %v994, 0.5
      %v996 = vadd.f32 %v995, 0.5
      %v997 = vmul.f32 %v996, %v908
      %999 = vrot.lane.b32.xlu0 %v994, 64
      %v1000 = vpop.permute.xlu0 %999
      %v1002 = vmul.f32 %v996, %v1000
      %1004 = vrot.lane.b32.xlu0 %v1002, 32
      %v1005 = vpop.permute.xlu0 %1004
      %v1007 = vadd.f32 %v997, %v1005
      %v1008 = vtanh.pop %v1007
      %1010 = vrot.lane.b32.xlu0 %v1008, 64
      %v1011 = vpop.permute.xlu0 %1010
      %v1013 = vmul.f32 %v996, %v1011
      %1015 = vrot.lane.b32.xlu0 %v1013, 32
      %v1016 = vpop.permute.xlu0 %1015
      %1018 = vst.msk [vmem:[#allocation3 + $0x4] sm:$0x1] %vm621, %v1016
      %v1019 = vld [vmem:[#allocation2 + $0x5] sm:$0x1]
      %v1020 = vsel %vm447, %v1016, 0
      %1022 = vmatprep.subr.mxu0 0.0
      %1023 = vmatpush1.msra.mxu0 %v431
      %1024 = vmatprep.subr.mxu0 0.0
      %1025 = vmatpush1.msra.mxu0 %v432
      %1026 = vmatprep.subr.mxu0 0.0
      %1027 = vmatpush1.msra.mxu0 %v433
      %1028 = vmatprep.subr.mxu0 0.0
      %1029 = vmatpush1.msra.mxu0 %v434
      %1030 = vmatprep.subr.mxu0 0.0
      %1031 = vmatpush1.msra.mxu0 0.0
      %1032 = vmatprep.subr.mxu0 0.0
      %1033 = vmatpush1.msra.mxu0 0.0
      %1034 = vmatprep.subr.mxu0 0.0
      %1035 = vmatpush1.msra.mxu0 0.0
      %1036 = vmatprep.subr.mxu0 0.0
      %1037 = vmatpush1.msra.mxu0 0.0
      %1038 = vmatprep.subr.mxu0 0.0
      %1039 = vmatpush1.msra.mxu0 0.0
      %1040 = vmatprep.subr.mxu0 0.0
      %1041 = vmatpush1.msra.mxu0 0.0
      %1042 = vmatprep.subr.mxu0 0.0
      %1043 = vmatpush1.msra.mxu0 0.0
      %1044 = vmatprep.subr.mxu0 0.0
      %1045 = vmatpush1.msra.mxu0 0.0
      %1046 = vmatprep.subr.mxu0 0.0
      %1047 = vmatpush1.msra.mxu0 0.0
      %1048 = vmatprep.subr.mxu0 0.0
      %1049 = vmatpush1.msra.mxu0 0.0
      %1050 = vmatprep.subr.mxu0 0.0
      %1051 = vmatpush1.msra.mxu0 0.0
      %1052 = vmatprep.subr.mxu0 0.0
      %1053 = vmatpush1.msra.mxu0 0.0
      %1054 = vmatprep.subr.mxu0 0.0
      %1055 = vmatpush1.msra.mxu0 0.0
      %1056 = vmatprep.subr.mxu0 0.0
      %1057 = vmatpush1.msra.mxu0 0.0
      %1058 = vmatprep.subr.mxu0 0.0
      %1059 = vmatpush1.msra.mxu0 0.0
      %1060 = vmatprep.subr.mxu0 0.0
      %1061 = vmatpush1.msra.mxu0 0.0
      %1062 = vmatprep.subr.mxu0 0.0
      %1063 = vmatpush1.msra.mxu0 0.0
      %1064 = vmatprep.subr.mxu0 0.0
      %1065 = vmatpush1.msra.mxu0 0.0
      %1066 = vmatprep.subr.mxu0 0.0
      %1067 = vmatpush1.msra.mxu0 0.0
      %1068 = vmatprep.subr.mxu0 0.0
      %1069 = vmatpush1.msra.mxu0 0.0
      %1070 = vmatprep.subr.mxu0 0.0
      %1071 = vmatpush1.msra.mxu0 0.0
      %1072 = vmatprep.subr.mxu0 0.0
      %1073 = vmatpush1.msra.mxu0 0.0
      %1074 = vmatprep.subr.mxu0 0.0
      %1075 = vmatpush1.msra.mxu0 0.0
      %1076 = vmatprep.subr.mxu0 0.0
      %1077 = vmatpush1.msra.mxu0 0.0
      %1078 = vmatprep.subr.mxu0 0.0
      %1079 = vmatpush1.msra.mxu0 0.0
      %1080 = vmatprep.subr.mxu0 0.0
      %1081 = vmatpush1.msra.mxu0 0.0
      %1082 = vmatprep.subr.mxu0 0.0
      %1083 = vmatpush1.msra.mxu0 0.0
      %1084 = vmatprep.subr.mxu0 0.0
      %1085 = vmatpush1.msra.mxu0 0.0
      %1086 = vmatprep.mubr.f32.mxu0 0.0
      %1087 = vmatmul.mubr.f32.gmra.mrb[0].mxu0 %v1020
      %v1088 = vpop.f32.mrb[0].mxu0
      %v1089 = vadd.f32 0.0, %v1088
      %v1090 = vpop.f32.mrb[0].mxu0
      %1091 = vdwg.mxu0
      %v1092 = vadd.f32 %v1019, %v1089
      %v1093 = vtanh.pop %v1092
      %v1094 = vmul.f32 %v1093, 0.5
      %v1095 = vadd.f32 %v1094, 0.5
      %v1096 = vmul.f32 %v1095, %v1007
      %1098 = vrot.lane.b32.xlu0 %v1093, 64
      %v1099 = vpop.permute.xlu0 %1098
      %v1101 = vmul.f32 %v1095, %v1099
      %1103 = vrot.lane.b32.xlu0 %v1101, 32
      %v1104 = vpop.permute.xlu0 %1103
      %v1106 = vadd.f32 %v1096, %v1104
      %v1107 = vtanh.pop %v1106
      %1109 = vrot.lane.b32.xlu0 %v1107, 64
      %v1110 = vpop.permute.xlu0 %1109
      %v1112 = vmul.f32 %v1095, %v1110
      %1114 = vrot.lane.b32.xlu0 %v1112, 32
      %v1115 = vpop.permute.xlu0 %1114
      %1117 = vst.msk [vmem:[#allocation3 + $0x5] sm:$0x1] %vm621, %v1115
      %v1118 = vld [vmem:[#allocation2 + $0x6] sm:$0x1]
      %v1119 = vsel %vm447, %v1115, 0
      %1121 = vmatprep.subr.mxu0 0.0
      %1122 = vmatpush1.msra.mxu0 %v431
      %1123 = vmatprep.subr.mxu0 0.0
      %1124 = vmatpush1.msra.mxu0 %v432
      %1125 = vmatprep.subr.mxu0 0.0
      %1126 = vmatpush1.msra.mxu0 %v433
      %1127 = vmatprep.subr.mxu0 0.0
      %1128 = vmatpush1.msra.mxu0 %v434
      %1129 = vmatprep.subr.mxu0 0.0
      %1130 = vmatpush1.msra.mxu0 0.0
      %1131 = vmatprep.subr.mxu0 0.0
      %1132 = vmatpush1.msra.mxu0 0.0
      %1133 = vmatprep.subr.mxu0 0.0
      %1134 = vmatpush1.msra.mxu0 0.0
      %1135 = vmatprep.subr.mxu0 0.0
      %1136 = vmatpush1.msra.mxu0 0.0
      %1137 = vmatprep.subr.mxu0 0.0
      %1138 = vmatpush1.msra.mxu0 0.0
      %1139 = vmatprep.subr.mxu0 0.0
      %1140 = vmatpush1.msra.mxu0 0.0
      %1141 = vmatprep.subr.mxu0 0.0
      %1142 = vmatpush1.msra.mxu0 0.0
      %1143 = vmatprep.subr.mxu0 0.0
      %1144 = vmatpush1.msra.mxu0 0.0
      %1145 = vmatprep.subr.mxu0 0.0
      %1146 = vmatpush1.msra.mxu0 0.0
      %1147 = vmatprep.subr.mxu0 0.0
      %1148 = vmatpush1.msra.mxu0 0.0
      %1149 = vmatprep.subr.mxu0 0.0
      %1150 = vmatpush1.msra.mxu0 0.0
      %1151 = vmatprep.subr.mxu0 0.0
      %1152 = vmatpush1.msra.mxu0 0.0
      %1153 = vmatprep.subr.mxu0 0.0
      %1154 = vmatpush1.msra.mxu0 0.0
      %1155 = vmatprep.subr.mxu0 0.0
      %1156 = vmatpush1.msra.mxu0 0.0
      %1157 = vmatprep.subr.mxu0 0.0
      %1158 = vmatpush1.msra.mxu0 0.0
      %1159 = vmatprep.subr.mxu0 0.0
      %1160 = vmatpush1.msra.mxu0 0.0
      %1161 = vmatprep.subr.mxu0 0.0
      %1162 = vmatpush1.msra.mxu0 0.0
      %1163 = vmatprep.subr.mxu0 0.0
      %1164 = vmatpush1.msra.mxu0 0.0
      %1165 = vmatprep.subr.mxu0 0.0
      %1166 = vmatpush1.msra.mxu0 0.0
      %1167 = vmatprep.subr.mxu0 0.0
      %1168 = vmatpush1.msra.mxu0 0.0
      %1169 = vmatprep.subr.mxu0 0.0
      %1170 = vmatpush1.msra.mxu0 0.0
      %1171 = vmatprep.subr.mxu0 0.0
      %1172 = vmatpush1.msra.mxu0 0.0
      %1173 = vmatprep.subr.mxu0 0.0
      %1174 = vmatpush1.msra.mxu0 0.0
      %1175 = vmatprep.subr.mxu0 0.0
      %1176 = vmatpush1.msra.mxu0 0.0
      %1177 = vmatprep.subr.mxu0 0.0
      %1178 = vmatpush1.msra.mxu0 0.0
      %1179 = vmatprep.subr.mxu0 0.0
      %1180 = vmatpush1.msra.mxu0 0.0
      %1181 = vmatprep.subr.mxu0 0.0
      %1182 = vmatpush1.msra.mxu0 0.0
      %1183 = vmatprep.subr.mxu0 0.0
      %1184 = vmatpush1.msra.mxu0 0.0
      %1185 = vmatprep.mubr.f32.mxu0 0.0
      %1186 = vmatmul.mubr.f32.gmra.mrb[0].mxu0 %v1119
      %v1187 = vpop.f32.mrb[0].mxu0
      %v1188 = vadd.f32 0.0, %v1187
      %v1189 = vpop.f32.mrb[0].mxu0
      %1190 = vdwg.mxu0
      %v1191 = vadd.f32 %v1118, %v1188
      %v1192 = vtanh.pop %v1191
      %v1193 = vmul.f32 %v1192, 0.5
      %v1194 = vadd.f32 %v1193, 0.5
      %v1195 = vmul.f32 %v1194, %v1106
      %1197 = vrot.lane.b32.xlu0 %v1192, 64
      %v1198 = vpop.permute.xlu0 %1197
      %v1200 = vmul.f32 %v1194, %v1198
      %1202 = vrot.lane.b32.xlu0 %v1200, 32
      %v1203 = vpop.permute.xlu0 %1202
      %v1205 = vadd.f32 %v1195, %v1203
      %v1206 = vtanh.pop %v1205
      %1208 = vrot.lane.b32.xlu0 %v1206, 64
      %v1209 = vpop.permute.xlu0 %1208
      %v1211 = vmul.f32 %v1194, %v1209
      %1213 = vrot.lane.b32.xlu0 %v1211, 32
      %v1214 = vpop.permute.xlu0 %1213
      %1216 = vst.msk [vmem:[#allocation3 + $0x6] sm:$0x1] %vm621, %v1214
      %v1217 = vld [vmem:[#allocation2 + $0x7] sm:$0x1]
      %v1218 = vsel %vm447, %v1214, 0
      %1220 = vmatprep.subr.mxu0 0.0
      %1221 = vmatpush1.msra.mxu0 %v431
      %1222 = vmatprep.subr.mxu0 0.0
      %1223 = vmatpush1.msra.mxu0 %v432
      %1224 = vmatprep.subr.mxu0 0.0
      %1225 = vmatpush1.msra.mxu0 %v433
      %1226 = vmatprep.subr.mxu0 0.0
      %1227 = vmatpush1.msra.mxu0 %v434
      %1228 = vmatprep.subr.mxu0 0.0
      %1229 = vmatpush1.msra.mxu0 0.0
      %1230 = vmatprep.subr.mxu0 0.0
      %1231 = vmatpush1.msra.mxu0 0.0
      %1232 = vmatprep.subr.mxu0 0.0
      %1233 = vmatpush1.msra.mxu0 0.0
      %1234 = vmatprep.subr.mxu0 0.0
      %1235 = vmatpush1.msra.mxu0 0.0
      %1236 = vmatprep.subr.mxu0 0.0
      %1237 = vmatpush1.msra.mxu0 0.0
      %1238 = vmatprep.subr.mxu0 0.0
      %1239 = vmatpush1.msra.mxu0 0.0
      %1240 = vmatprep.subr.mxu0 0.0
      %1241 = vmatpush1.msra.mxu0 0.0
      %1242 = vmatprep.subr.mxu0 0.0
      %1243 = vmatpush1.msra.mxu0 0.0
      %1244 = vmatprep.subr.mxu0 0.0
      %1245 = vmatpush1.msra.mxu0 0.0
      %1246 = vmatprep.subr.mxu0 0.0
      %1247 = vmatpush1.msra.mxu0 0.0
      %1248 = vmatprep.subr.mxu0 0.0
      %1249 = vmatpush1.msra.mxu0 0.0
      %1250 = vmatprep.subr.mxu0 0.0
      %1251 = vmatpush1.msra.mxu0 0.0
      %1252 = vmatprep.subr.mxu0 0.0
      %1253 = vmatpush1.msra.mxu0 0.0
      %1254 = vmatprep.subr.mxu0 0.0
      %1255 = vmatpush1.msra.mxu0 0.0
      %1256 = vmatprep.subr.mxu0 0.0
      %1257 = vmatpush1.msra.mxu0 0.0
      %1258 = vmatprep.subr.mxu0 0.0
      %1259 = vmatpush1.msra.mxu0 0.0
      %1260 = vmatprep.subr.mxu0 0.0
      %1261 = vmatpush1.msra.mxu0 0.0
      %1262 = vmatprep.subr.mxu0 0.0
      %1263 = vmatpush1.msra.mxu0 0.0
      %1264 = vmatprep.subr.mxu0 0.0
      %1265 = vmatpush1.msra.mxu0 0.0
      %1266 = vmatprep.subr.mxu0 0.0
      %1267 = vmatpush1.msra.mxu0 0.0
      %1268 = vmatprep.subr.mxu0 0.0
      %1269 = vmatpush1.msra.mxu0 0.0
      %1270 = vmatprep.subr.mxu0 0.0
      %1271 = vmatpush1.msra.mxu0 0.0
      %1272 = vmatprep.subr.mxu0 0.0
      %1273 = vmatpush1.msra.mxu0 0.0
      %1274 = vmatprep.subr.mxu0 0.0
      %1275 = vmatpush1.msra.mxu0 0.0
      %1276 = vmatprep.subr.mxu0 0.0
      %1277 = vmatpush1.msra.mxu0 0.0
      %1278 = vmatprep.subr.mxu0 0.0
      %1279 = vmatpush1.msra.mxu0 0.0
      %1280 = vmatprep.subr.mxu0 0.0
      %1281 = vmatpush1.msra.mxu0 0.0
      %1282 = vmatprep.subr.mxu0 0.0
      %1283 = vmatpush1.msra.mxu0 0.0
      %1284 = vmatprep.mubr.f32.mxu0 0.0
      %1285 = vmatmul.mubr.f32.gmra.mrb[0].mxu0 %v1218
      %v1286 = vpop.f32.mrb[0].mxu0
      %v1287 = vadd.f32 0.0, %v1286
      %v1288 = vpop.f32.mrb[0].mxu0
      %1289 = vdwg.mxu0
      %v1290 = vadd.f32 %v1217, %v1287
      %v1291 = vtanh.pop %v1290
      %v1292 = vmul.f32 %v1291, 0.5
      %v1293 = vadd.f32 %v1292, 0.5
      %v1294 = vmul.f32 %v1293, %v1205
      %1296 = vrot.lane.b32.xlu0 %v1291, 64
      %v1297 = vpop.permute.xlu0 %1296
      %v1299 = vmul.f32 %v1293, %v1297
      %1301 = vrot.lane.b32.xlu0 %v1299, 32
      %v1302 = vpop.permute.xlu0 %1301
      %v1304 = vadd.f32 %v1294, %v1302
      %v1305 = vtanh.pop %v1304
      %1307 = vrot.lane.b32.xlu0 %v1305, 64
      %v1308 = vpop.permute.xlu0 %1307
      %v1310 = vmul.f32 %v1293, %v1308
      %1312 = vrot.lane.b32.xlu0 %v1310, 32
      %v1313 = vpop.permute.xlu0 %1312
      %1315 = vst.msk [vmem:[#allocation3 + $0x7] sm:$0x1] %vm621, %v1313
      %v1316 = vld [vmem:[#allocation3] sm:$0xff]
      %v1317 = vld [vmem:[%s6] sm:$0xff]
      %v1318 = vld [vmem:[%s6 + $0x8] sm:$0xff]
      %v1319 = vld [vmem:[%s6 + $0x10] sm:$0xff]
      %v1320 = vld [vmem:[%s6 + $0x18] sm:$0xff]
      %v1321 = vld [vmem:[%s7] sm:$0x1]
      %v1323 = vlaneseq
      %v1324 = vshrl.u32 %v1323, 7
      %v1325 = vsub.s32 0, %v1324
      %v1326 = vrot.slane %v1321, %v1325
      %v1329 = vsel %vm447, %v1316, 0
      %1331 = vmatprep.subr.mxu0 0.0
      %1332 = vmatpush1.msra.mxu0 %v1317
      %1333 = vmatprep.subr.mxu0 0.0
      %1334 = vmatpush1.msra.mxu0 %v1318
      %1335 = vmatprep.subr.mxu0 0.0
      %1336 = vmatpush1.msra.mxu0 %v1319
      %1337 = vmatprep.subr.mxu0 0.0
      %1338 = vmatpush1.msra.mxu0 %v1320
      %1339 = vmatprep.subr.mxu0 0.0
      %1340 = vmatpush1.msra.mxu0 0.0
      %1341 = vmatprep.subr.mxu0 0.0
      %1342 = vmatpush1.msra.mxu0 0.0
      %1343 = vmatprep.subr.mxu0 0.0
      %1344 = vmatpush1.msra.mxu0 0.0
      %1345 = vmatprep.subr.mxu0 0.0
      %1346 = vmatpush1.msra.mxu0 0.0
      %1347 = vmatprep.subr.mxu0 0.0
      %1348 = vmatpush1.msra.mxu0 0.0
      %1349 = vmatprep.subr.mxu0 0.0
      %1350 = vmatpush1.msra.mxu0 0.0
      %1351 = vmatprep.subr.mxu0 0.0
      %1352 = vmatpush1.msra.mxu0 0.0
      %1353 = vmatprep.subr.mxu0 0.0
      %1354 = vmatpush1.msra.mxu0 0.0
      %1355 = vmatprep.subr.mxu0 0.0
      %1356 = vmatpush1.msra.mxu0 0.0
      %1357 = vmatprep.subr.mxu0 0.0
      %1358 = vmatpush1.msra.mxu0 0.0
      %1359 = vmatprep.subr.mxu0 0.0
      %1360 = vmatpush1.msra.mxu0 0.0
      %1361 = vmatprep.subr.mxu0 0.0
      %1362 = vmatpush1.msra.mxu0 0.0
      %1363 = vmatprep.subr.mxu0 0.0
      %1364 = vmatpush1.msra.mxu0 0.0
      %1365 = vmatprep.subr.mxu0 0.0
      %1366 = vmatpush1.msra.mxu0 0.0
      %1367 = vmatprep.subr.mxu0 0.0
      %1368 = vmatpush1.msra.mxu0 0.0
      %1369 = vmatprep.subr.mxu0 0.0
      %1370 = vmatpush1.msra.mxu0 0.0
      %1371 = vmatprep.subr.mxu0 0.0
      %1372 = vmatpush1.msra.mxu0 0.0
      %1373 = vmatprep.subr.mxu0 0.0
      %1374 = vmatpush1.msra.mxu0 0.0
      %1375 = vmatprep.subr.mxu0 0.0
      %1376 = vmatpush1.msra.mxu0 0.0
      %1377 = vmatprep.subr.mxu0 0.0
      %1378 = vmatpush1.msra.mxu0 0.0
      %1379 = vmatprep.subr.mxu0 0.0
      %1380 = vmatpush1.msra.mxu0 0.0
      %1381 = vmatprep.subr.mxu0 0.0
      %1382 = vmatpush1.msra.mxu0 0.0
      %1383 = vmatprep.subr.mxu0 0.0
      %1384 = vmatpush1.msra.mxu0 0.0
      %1385 = vmatprep.subr.mxu0 0.0
      %1386 = vmatpush1.msra.mxu0 0.0
      %1387 = vmatprep.subr.mxu0 0.0
      %1388 = vmatpush1.msra.mxu0 0.0
      %1389 = vmatprep.subr.mxu0 0.0
      %1390 = vmatpush1.msra.mxu0 0.0
      %1391 = vmatprep.subr.mxu0 0.0
      %1392 = vmatpush1.msra.mxu0 0.0
      %1393 = vmatprep.subr.mxu0 0.0
      %1394 = vmatpush1.msra.mxu0 0.0
      %1395 = vmatprep.mubr.f32.mxu0 0.0
      %1396 = vmatmul.mubr.f32.gmra.mrb[0].mxu0 %v1329
      %v1397 = vpop.f32.mrb[0].mxu0
      %v1398 = vadd.f32 %v1326, %v1397
      %v1399 = vpop.f32.mrb[0].mxu0
      %1400 = vdwg.mxu0
      %v1401 = vld [vmem:[%s419] sm:$0xff]
      %vm1402 = vcmask 64512
      %v1404 = vsel %vm1402, %v1401, 0
      %1406 = vmatprep.subr.mxu0 0.0
      %1407 = vmatpush1.msra.mxu0 %v1398
      %1408 = vmatprep.subr.mxu0 0.0
      %1409 = vmatpush1.msra.mxu0 0.0
      %1410 = vmatprep.subr.mxu0 0.0
      %1411 = vmatpush1.msra.mxu0 0.0
      %1412 = vmatprep.subr.mxu0 0.0
      %1413 = vmatpush1.msra.mxu0 0.0
      %1414 = vmatprep.subr.mxu0 0.0
      %1415 = vmatpush1.msra.mxu0 0.0
      %1416 = vmatprep.subr.mxu0 0.0
      %1417 = vmatpush1.msra.mxu0 0.0
      %1418 = vmatprep.subr.mxu0 0.0
      %1419 = vmatpush1.msra.mxu0 0.0
      %1420 = vmatprep.subr.mxu0 0.0
      %1421 = vmatpush1.msra.mxu0 0.0
      %1422 = vmatprep.subr.mxu0 0.0
      %1423 = vmatpush1.msra.mxu0 0.0
      %1424 = vmatprep.subr.mxu0 0.0
      %1425 = vmatpush1.msra.mxu0 0.0
      %1426 = vmatprep.subr.mxu0 0.0
      %1427 = vmatpush1.msra.mxu0 0.0
      %1428 = vmatprep.subr.mxu0 0.0
      %1429 = vmatpush1.msra.mxu0 0.0
      %1430 = vmatprep.subr.mxu0 0.0
      %1431 = vmatpush1.msra.mxu0 0.0
      %1432 = vmatprep.subr.mxu0 0.0
      %1433 = vmatpush1.msra.mxu0 0.0
      %1434 = vmatprep.subr.mxu0 0.0
      %1435 = vmatpush1.msra.mxu0 0.0
      %1436 = vmatprep.subr.mxu0 0.0
      %1437 = vmatpush1.msra.mxu0 0.0
      %1438 = vmatprep.subr.mxu0 0.0
      %1439 = vmatpush1.msra.mxu0 0.0
      %1440 = vmatprep.subr.mxu0 0.0
      %1441 = vmatpush1.msra.mxu0 0.0
      %1442 = vmatprep.subr.mxu0 0.0
      %1443 = vmatpush1.msra.mxu0 0.0
      %1444 = vmatprep.subr.mxu0 0.0
      %1445 = vmatpush1.msra.mxu0 0.0
      %1446 = vmatprep.subr.mxu0 0.0
      %1447 = vmatpush1.msra.mxu0 0.0
      %1448 = vmatprep.subr.mxu0 0.0
      %1449 = vmatpush1.msra.mxu0 0.0
      %1450 = vmatprep.subr.mxu0 0.0
      %1451 = vmatpush1.msra.mxu0 0.0
      %1452 = vmatprep.subr.mxu0 0.0
      %1453 = vmatpush1.msra.mxu0 0.0
      %1454 = vmatprep.subr.mxu0 0.0
      %1455 = vmatpush1.msra.mxu0 0.0
      %1456 = vmatprep.subr.mxu0 0.0
      %1457 = vmatpush1.msra.mxu0 0.0
      %1458 = vmatprep.subr.mxu0 0.0
      %1459 = vmatpush1.msra.mxu0 0.0
      %1460 = vmatprep.subr.mxu0 0.0
      %1461 = vmatpush1.msra.mxu0 0.0
      %1462 = vmatprep.subr.mxu0 0.0
      %1463 = vmatpush1.msra.mxu0 0.0
      %1464 = vmatprep.subr.mxu0 0.0
      %1465 = vmatpush1.msra.mxu0 0.0
      %1466 = vmatprep.subr.mxu0 0.0
      %1467 = vmatpush1.msra.mxu0 0.0
      %1468 = vmatprep.subr.mxu0 0.0
      %1469 = vmatpush1.msra.mxu0 0.0
      %1470 = vmatprep.mubr.f32.mxu0 0.0
      %1471 = vmatmul.mubr.f32.gmra.mrb[0].mxu0 %v1404
      %v1472 = vpop.f32.mrb[0].mxu0
      %v1473 = vadd.f32 0.0, %v1472
      %v1474 = vpop.f32.mrb[0].mxu0
      %1475 = vdwg.mxu0
      %v1476 = vld [vmem:[%s423] sm:$0xff]
      %1478 = vrot.lane.b32.xlu0 %v1398, 112
      %v1479 = vpop.permute.xlu0 %1478
      %v1482 = vsel %vm1402, %v1476, 0
      %1484 = vmatprep.subr.mxu0 0.0
      %1485 = vmatpush1.msra.mxu0 %v1479
      %1486 = vmatprep.subr.mxu0 0.0
      %1487 = vmatpush1.msra.mxu0 0.0
      %1488 = vmatprep.subr.mxu0 0.0
      %1489 = vmatpush1.msra.mxu0 0.0
      %1490 = vmatprep.subr.mxu0 0.0
      %1491 = vmatpush1.msra.mxu0 0.0
      %1492 = vmatprep.subr.mxu0 0.0
      %1493 = vmatpush1.msra.mxu0 0.0
      %1494 = vmatprep.subr.mxu0 0.0
      %1495 = vmatpush1.msra.mxu0 0.0
      %1496 = vmatprep.subr.mxu0 0.0
      %1497 = vmatpush1.msra.mxu0 0.0
      %1498 = vmatprep.subr.mxu0 0.0
      %1499 = vmatpush1.msra.mxu0 0.0
      %1500 = vmatprep.subr.mxu0 0.0
      %1501 = vmatpush1.msra.mxu0 0.0
      %1502 = vmatprep.subr.mxu0 0.0
      %1503 = vmatpush1.msra.mxu0 0.0
      %1504 = vmatprep.subr.mxu0 0.0
      %1505 = vmatpush1.msra.mxu0 0.0
      %1506 = vmatprep.subr.mxu0 0.0
      %1507 = vmatpush1.msra.mxu0 0.0
      %1508 = vmatprep.subr.mxu0 0.0
      %1509 = vmatpush1.msra.mxu0 0.0
      %1510 = vmatprep.subr.mxu0 0.0
      %1511 = vmatpush1.msra.mxu0 0.0
      %1512 = vmatprep.subr.mxu0 0.0
      %1513 = vmatpush1.msra.mxu0 0.0
      %1514 = vmatprep.subr.mxu0 0.0
      %1515 = vmatpush1.msra.mxu0 0.0
      %1516 = vmatprep.subr.mxu0 0.0
      %1517 = vmatpush1.msra.mxu0 0.0
      %1518 = vmatprep.subr.mxu0 0.0
      %1519 = vmatpush1.msra.mxu0 0.0
      %1520 = vmatprep.subr.mxu0 0.0
      %1521 = vmatpush1.msra.mxu0 0.0
      %1522 = vmatprep.subr.mxu0 0.0
      %1523 = vmatpush1.msra.mxu0 0.0
      %1524 = vmatprep.subr.mxu0 0.0
      %1525 = vmatpush1.msra.mxu0 0.0
      %1526 = vmatprep.subr.mxu0 0.0
      %1527 = vmatpush1.msra.mxu0 0.0
      %1528 = vmatprep.subr.mxu0 0.0
      %1529 = vmatpush1.msra.mxu0 0.0
      %1530 = vmatprep.subr.mxu0 0.0
      %1531 = vmatpush1.msra.mxu0 0.0
      %1532 = vmatprep.subr.mxu0 0.0
      %1533 = vmatpush1.msra.mxu0 0.0
      %1534 = vmatprep.subr.mxu0 0.0
      %1535 = vmatpush1.msra.mxu0 0.0
      %1536 = vmatprep.subr.mxu0 0.0
      %1537 = vmatpush1.msra.mxu0 0.0
      %1538 = vmatprep.subr.mxu0 0.0
      %1539 = vmatpush1.msra.mxu0 0.0
      %1540 = vmatprep.subr.mxu0 0.0
      %1541 = vmatpush1.msra.mxu0 0.0
      %1542 = vmatprep.subr.mxu0 0.0
      %1543 = vmatpush1.msra.mxu0 0.0
      %1544 = vmatprep.subr.mxu0 0.0
      %1545 = vmatpush1.msra.mxu0 0.0
      %1546 = vmatprep.subr.mxu0 0.0
      %1547 = vmatpush1.msra.mxu0 0.0
      %1548 = vmatprep.mubr.f32.mxu0 0.0
      %1549 = vmatmul.mubr.f32.gmra.mrb[0].mxu0 %v1482
      %v1550 = vpop.f32.mrb[0].mxu0
      %v1551 = vadd.f32 0.0, %v1550
      %v1552 = vpop.f32.mrb[0].mxu0
      %1553 = vdwg.mxu0
      %1555 = vrot.lane.b32.xlu0 %v1473, 32
      %v1556 = vpop.permute.xlu0 %1555
      %v1558 = vadd.f32 %v1398, %v1556
      %1560 = vrot.lane.b32.xlu0 %v1551, 32
      %v1561 = vpop.permute.xlu0 %1560
      %v1563 = vadd.f32 %v1558, %v1561
      %v1564 = vtanh.pop %v1563
      %v1565 = vld [vmem:[%s8] sm:$0xff]
      %v1566 = vld [vmem:[%s8 + $0x8] sm:$0xff]
      %v1567 = vld [vmem:[%s9] sm:$0x1]
      %v1569 = vlaneseq
      %v1570 = vshrl.u32 %v1569, 7
      %v1571 = vsub.s32 0, %v1570
      %v1572 = vrot.slane %v1567, %v1571
      %1575 = vrot.lane.b32.xlu0 %v1564, 96
      %v1576 = vpop.permute.xlu0 %1575
      %vm1577 = vcmask 130048
      %v1578 = vsel %vm1577, %v1576, 0
      %1580 = vmatprep.subr.mxu0 0.0
      %1581 = vmatpush1.msra.mxu0 %v1565
      %1582 = vmatprep.subr.mxu0 0.0
      %1583 = vmatpush1.msra.mxu0 %v1566
      %1584 = vmatprep.subr.mxu0 0.0
      %1585 = vmatpush1.msra.mxu0 0.0
      %1586 = vmatprep.subr.mxu0 0.0
      %1587 = vmatpush1.msra.mxu0 0.0
      %1588 = vmatprep.subr.mxu0 0.0
      %1589 = vmatpush1.msra.mxu0 0.0
      %1590 = vmatprep.subr.mxu0 0.0
      %1591 = vmatpush1.msra.mxu0 0.0
      %1592 = vmatprep.subr.mxu0 0.0
      %1593 = vmatpush1.msra.mxu0 0.0
      %1594 = vmatprep.subr.mxu0 0.0
      %1595 = vmatpush1.msra.mxu0 0.0
      %1596 = vmatprep.subr.mxu0 0.0
      %1597 = vmatpush1.msra.mxu0 0.0
      %1598 = vmatprep.subr.mxu0 0.0
      %1599 = vmatpush1.msra.mxu0 0.0
      %1600 = vmatprep.subr.mxu0 0.0
      %1601 = vmatpush1.msra.mxu0 0.0
      %1602 = vmatprep.subr.mxu0 0.0
      %1603 = vmatpush1.msra.mxu0 0.0
      %1604 = vmatprep.subr.mxu0 0.0
      %1605 = vmatpush1.msra.mxu0 0.0
      %1606 = vmatprep.subr.mxu0 0.0
      %1607 = vmatpush1.msra.mxu0 0.0
      %1608 = vmatprep.subr.mxu0 0.0
      %1609 = vmatpush1.msra.mxu0 0.0
      %1610 = vmatprep.subr.mxu0 0.0
      %1611 = vmatpush1.msra.mxu0 0.0
      %1612 = vmatprep.subr.mxu0 0.0
      %1613 = vmatpush1.msra.mxu0 0.0
      %1614 = vmatprep.subr.mxu0 0.0
      %1615 = vmatpush1.msra.mxu0 0.0
      %1616 = vmatprep.subr.mxu0 0.0
      %1617 = vmatpush1.msra.mxu0 0.0
      %1618 = vmatprep.subr.mxu0 0.0
      %1619 = vmatpush1.msra.mxu0 0.0
      %1620 = vmatprep.subr.mxu0 0.0
      %1621 = vmatpush1.msra.mxu0 0.0
      %1622 = vmatprep.subr.mxu0 0.0
      %1623 = vmatpush1.msra.mxu0 0.0
      %1624 = vmatprep.subr.mxu0 0.0
      %1625 = vmatpush1.msra.mxu0 0.0
      %1626 = vmatprep.subr.mxu0 0.0
      %1627 = vmatpush1.msra.mxu0 0.0
      %1628 = vmatprep.subr.mxu0 0.0
      %1629 = vmatpush1.msra.mxu0 0.0
      %1630 = vmatprep.subr.mxu0 0.0
      %1631 = vmatpush1.msra.mxu0 0.0
      %1632 = vmatprep.subr.mxu0 0.0
      %1633 = vmatpush1.msra.mxu0 0.0
      %1634 = vmatprep.subr.mxu0 0.0
      %1635 = vmatpush1.msra.mxu0 0.0
      %1636 = vmatprep.subr.mxu0 0.0
      %1637 = vmatpush1.msra.mxu0 0.0
      %1638 = vmatprep.subr.mxu0 0.0
      %1639 = vmatpush1.msra.mxu0 0.0
      %1640 = vmatprep.subr.mxu0 0.0
      %1641 = vmatpush1.msra.mxu0 0.0
      %1642 = vmatprep.subr.mxu0 0.0
      %1643 = vmatpush1.msra.mxu0 0.0
      %1644 = vmatprep.mubr.f32.mxu0 0.0
      %1645 = vmatmul.mubr.f32.gmra.mrb[0].mxu0 %v1578
      %v1646 = vpop.f32.mrb[0].mxu0
      %v1647 = vadd.f32 %v1572, %v1646
      %v1648 = vpop.f32.mrb[0].mxu0
      %1649 = vdwg.mxu0
      %1650 = vmax.xlane.f32.xlu0 %v1647
      %v1651 = vpop.xlane.xlu0 %1650
      %v1652 = vsub.f32 %v1647, %v1651
      %v1653 = vmul.f32 %v1652, 1.442695
      %v1654 = vpow.pop %v1653
      %1655 = vadd.xlane.f32.xlu0 %v1654
      %v1656 = vpop.xlane.xlu0 %1655
      %v1657 = vlog2.pop %v1656
      %v1658 = vmul.f32 %v1657, 0.6931472
      %v1659 = vlaneseq
      %v1660 = vand.u32 %v1659, 127
      %v1661 = vld [vmem:[%s427] sm:$0xff]
      %1662 = vset.pattern.permute.xlu0 0
      %1663 = vperm.xlu0 %1662, %v1661
      %v1664 = vpop.permute.xlu0 %1663
      %vm1665 = vcmp.eq.s32.totalorder %v1660, %v1664
      %v1666 = vsel %vm1665, 1, 0
      %v1667 = vcvt.s32.f32 %v1666
      %v1668 = vmul.f32 %v1667, %v1652
      %1669 = vadd.xlane.f32.xlu0 %v1668
      %v1670 = vpop.xlane.xlu0 %1669
      %v1671 = vsub.f32 %v1658, %v1670
      %v1672 = vrot.slane %v1671, 4
      %v1673 = vadd.f32 %v1671, %v1672
      %v1674 = vrot.slane %v1673, 2
      %v1675 = vadd.f32 %v1673, %v1674
      %v1676 = vrot.slane %v1675, 1
      %v1677 = vadd.f32 %v1675, %v1676
      %v1678 = vmul.f32 %v1677, 0.125
      %vm1679 = vcmask 0
      %1680 = vst.msk [vmem:[%s430] sm:$0x1] %vm1679, %v1678
      %p1681 = scmp.lt.s32.totalorder %s22, 1
      %s1682 = scalar_select %p1681, %s22, 1
      %s1683 = scalar_lea.vmem %s11, %s1682
      // Predicated region
      $region65: #{decoder_forward_batch.1} parent=63 // pred_check
        %p1684 = pneg %p291
      $region66: #{decoder_forward_batch.1} parent=63 // pred_check_branch
        %1686 = sbr.rel (%p1684) target = $region68
      $region67: #{decoder_forward_batch.1} parent=63 // pred_region
        _
      $region68: #{decoder_forward_batch.1} parent=63 // pred_fallthru
        _
    $region64: #{decoder_forward_batch.1} parent=5 // pred_fallthru
      _
    %p1687 = scmp.le.s32.totalorder 2, %s17
    // Predicated region
    $region69: #{decoder_forward_batch.1} parent=5 // pred_check
      %p1688 = pneg %p1687
    $region70: #{decoder_forward_batch.1} parent=5 // pred_check_branch
      %1690 = sbr.rel (%p1688) target = $region72
    $region71: #{decoder_forward_batch.1} parent=5 // pred_region
      %s1691 = ssub.s32 %s17, 2
      // Predicated region
      $region73: #{decoder_forward_batch.1} parent=71 // pred_check
        %p1692 = pneg %p297
      $region74: #{decoder_forward_batch.1} parent=71 // pred_check_branch
        %1694 = sbr.rel (%p1692) target = $region76
      $region75: #{decoder_forward_batch.1} parent=71 // pred_region
        %p1695 = scmp.lt.s32.totalorder %s23, 1
        %s1696 = scalar_select %p1695, %s23, 1
        %s1697 = scalar_lea.vmem %s11, %s1696
      $region76: #{decoder_forward_batch.1} parent=71 // pred_fallthru
        _
    $region72: #{decoder_forward_batch.1} parent=5 // pred_fallthru
      _
  $region6: #{decoder_forward_batch.1} parent=0 // loop_footer
    %s21 = sadd.s32 1, %s17
  $region7: #{decoder_forward_batch.1} parent=0 // loop_footer_branch
    %16 = sbr.rel target = $region3
  $region8: #{decoder_forward_batch.1} parent=0 // loop_exit
    _

</llo_original>
